<compile_context>
chip_gen: v7x
topology: tpu7x:2x2x1
jax: 0.10.0
libtpu: 0.0.40
codegen_flags: <defaults>
</compile_context>

<pallas_src>
import math

import jax
import jax.numpy as jnp
from jax.experimental import pallas as pl
from jax.experimental.pallas import tpu as pltpu  # noqa: F401  (TPU backend)

LOG2PI = math.log(2.0 * math.pi)
PACK_LANES = 128  # lane-dense packed-stats output width


# --------------------------------------------------------------------------
# Single fused kernel
# --------------------------------------------------------------------------
def _make_fused_kernel(D, K):
    inv_k = 1.0 / float(K)

    def kernel(x_ref, eps_ref, enc_w_ref, enc_b_ref, logiw_ref,
               inv_w_ref, inv_b_ref, dec_w_ref, dec_b_ref,
               recon_ref, packed_ref):
        x = x_ref[...]                       # (B, P)
        eps = eps_ref[...]                   # (B, D)
        B = x.shape[0]

        # ---- encoder: one (B,P)x(P,2D) MXU pass; slice mu / logvar ----
        enc = jnp.dot(x, enc_w_ref[...],
                      preferred_element_type=jnp.float32) + enc_b_ref[...]
        mu = enc[:, :D]
        lv = enc[:, D:]
        std = jnp.exp(0.5 * lv)
        z = mu + eps * std                   # reparameterisation

        # ---- beta-TC statistics ----
        def logdens(zz, m, l):
            return -0.5 * (LOG2PI + l) - 0.5 * (zz - m) ** 2 * jnp.exp(-l)

        logqzx = jnp.sum(logdens(z, mu, lv), axis=-1, keepdims=True)       # (B,1)
        logpz = jnp.sum(-0.5 * LOG2PI - 0.5 * z * z, axis=-1, keepdims=True)

        pair = logdens(z[:, None, :], mu[None, :, :], lv[None, :, :])      # (B,B,D)
        # log_iw added per-dim BEFORE the axis-2 sum, exactly as in the spec.
        pair = pair + logiw_ref[...][:, :, None]

        def lse(v, axis):
            m = jnp.max(v, axis=axis, keepdims=True)
            return m + jnp.log(jnp.sum(jnp.exp(v - m), axis=axis, keepdims=True))

        logqz_prod = jnp.sum(jnp.squeeze(lse(pair, axis=1), axis=1),
                             axis=-1, keepdims=True)                       # (B,1)
        logqz = lse(jnp.sum(pair, axis=2), axis=1)                         # (B,1)
        ori_kld = -0.5 * jnp.sum(1.0 + lv - mu * mu - jnp.exp(lv),
                                 axis=-1, keepdims=True)                   # (B,1)

        # ---- K inv/equ heads as one (B,D)x(D,K*2D) matmul ----
        # TODO(synk): exact Invert_Equiv_Func architecture not given in the
        # reference; realised as a linear (mu, logvar) map + reparameterised
        # new_z, per-dim KL and per-sample MSE regulariser.
        # eps == (z - mu) / std, so the original eps is reused directly.
        inv = jnp.dot(z, inv_w_ref[...],
                      preferred_element_type=jnp.float32) + inv_b_ref[...]  # (B,K*2D)
        kl_b = jnp.zeros_like(logqzx)
        reg_b = jnp.zeros_like(logqzx)
        z_mean = jnp.zeros_like(z)
        for k in range(K):                   # static unroll, K is tiny
            nm = inv[:, 2 * k * D: 2 * k * D + D]
            nl = inv[:, 2 * k * D + D: 2 * (k + 1) * D]
            nz = nm + eps * jnp.exp(0.5 * nl)
            kl_b += jnp.sum(-0.5 * (1.0 + nl - nm * nm - jnp.exp(nl)),
                            axis=-1, keepdims=True)
            reg_b += jnp.mean((nz - z) ** 2, axis=-1, keepdims=True)
            z_mean += nz
        z_mean = z_mean * inv_k

        # ---- decoder (linear => mean over heads commutes with decode) ----
        # TODO(synk): dataset decoder not given; linear map, loss_fn := SSE.
        dec = jnp.dot(z_mean, dec_w_ref[...],
                      preferred_element_type=jnp.float32) + dec_b_ref[...]  # (B,P)
        diff = dec - x
        sse_b = jnp.sum(diff * diff, axis=-1, keepdims=True)                # (B,1)

        recon_ref[...] = dec

        # ---- single lane-dense (B, 128) packed output, ONE unmasked store ----
        stats = jnp.concatenate(
            [logqzx, logpz, logqz, logqz_prod, ori_kld, kl_b, reg_b, sse_b],
            axis=-1)                                                        # (B,8)
        pad = jnp.zeros((B, PACK_LANES - (3 * D + 8)), jnp.float32)
        packed_ref[...] = jnp.concatenate([z, mu, lv, stats, pad], axis=-1)

    return kernel


def run_fused(x_flat, eps, log_iw, params, K):
    B, P = x_flat.shape
    D = eps.shape[1]
    assert 3 * D + 8 <= PACK_LANES
    out_shape = (
        jax.ShapeDtypeStruct((B, P), jnp.float32),           # recon (lane-dense)
        jax.ShapeDtypeStruct((B, PACK_LANES), jnp.float32),   # packed stats
    )
    return pl.pallas_call(
        _make_fused_kernel(D, K),
        out_shape=out_shape,
        compiler_params=pltpu.CompilerParams(vmem_limit_bytes=64 << 20),
    )(x_flat, eps,
      params["enc_w"], params["enc_b"], log_iw,
      params["inv_w"], params["inv_b"],
      params["dec_w"], params["dec_b"])


# --------------------------------------------------------------------------
# Importance-weight matrix (mirrors the PyTorch index arithmetic exactly)
# --------------------------------------------------------------------------
def log_importance_weights(batch, dataset_size):
    strat = (dataset_size - batch + 1) / (dataset_size * (batch - 1))
    iw = jnp.full((batch, batch), 1.0 / (batch - 1), jnp.float32)
    flat = iw.reshape(-1)
    flat = flat.at[::batch].set(1.0 / dataset_size)
    flat = flat.at[1::batch].set(strat)
    iw = flat.reshape(batch, batch)
    iw = iw.at[batch - 2, 0].set(strat)
    return jnp.log(iw)


# --------------------------------------------------------------------------
# Full forward pass
# --------------------------------------------------------------------------
def mipet_betatcvae_forward(x, eps, params, *, num_inv_equ, dataset_size):
    B, C, H, W = x.shape
    D = eps.shape[1]
    x_flat = x.reshape(B, C * H * W).astype(jnp.float32)
    log_iw = log_importance_weights(B, dataset_size)

    recon_flat, packed = run_fused(x_flat, eps, log_iw, params, num_inv_equ)

    # unpack the lane-dense per-sample block
    z = packed[:, 0:D]
    mu = packed[:, D:2 * D]
    logvar = packed[:, 2 * D:3 * D]
    s = 3 * D
    logqzx = packed[:, s + 0]
    logpz = packed[:, s + 1]
    logqz = packed[:, s + 2]
    logqz_prod = packed[:, s + 3]
    ori_kld = packed[:, s + 4]
    kl_b = packed[:, s + 5]
    reg_b = packed[:, s + 6]
    sse_b = packed[:, s + 7]

    # tiny scalar glue (batch means), identical to the reference arithmetic
    mi = jnp.mean(logqzx - logqz)
    tc = jnp.mean(logqz - logqz_prod)
    kld = jnp.mean(logqz_prod - logpz)
    reconst_err = jnp.mean(sse_b)                       # SSE / batch
    reg_scalar = jnp.mean(reg_b) + jnp.mean((kl_b - num_inv_equ * ori_kld) ** 2)
    ori_scalar = jnp.mean(ori_kld)

    recon_img = recon_flat.reshape(B, C, H, W)
    enc_output = (z, mu, logvar)
    new_output = (recon_img,)

    result = {
        "elbo": {},
        "obj": {
            "reconst": jnp.reshape(reconst_err, (1,)),
            "kld": jnp.reshape(kld, (1,)),
            "mi": jnp.reshape(mi, (1,)),
            "tc": jnp.reshape(tc, (1,)),
            "reg": jnp.reshape(reg_scalar, (1,)),
            "origin_kld": jnp.reshape(ori_scalar, (1,)),
        },
        "id": {},
    }
    return (result,) + (enc_output,) + (new_output,)


# --------------------------------------------------------------------------
# Deterministic parameter construction (concatenated weight layout)
# --------------------------------------------------------------------------
def make_params(key, in_dim, latent_dim, out_dim, num_inv_equ):
    def glorot(k, shape):
        fan_in, fan_out = shape[-2], shape[-1]
        lim = math.sqrt(6.0 / (fan_in + fan_out))
        return jax.random.uniform(k, shape, jnp.float32, -lim, lim)

    ks = jax.random.split(key, 4)
    D = latent_dim
    return {
        # [W_mu | W_logvar] fused
        "enc_w": glorot(ks[0], (in_dim, 2 * D)),
        "enc_b": jnp.zeros((1, 2 * D), jnp.float32),
        # all K heads fused: per head [W_mu_k | W_logvar_k] blocks of width 2D
        "inv_w": glorot(ks[1], (D, num_inv_equ * 2 * D)),
        "inv_b": jnp.zeros((1, num_inv_equ * 2 * D), jnp.float32),
        "dec_w": glorot(ks[2], (D, out_dim)),
        "dec_b": jnp.zeros((1, out_dim), jnp.float32),
    }


if __name__ == "__main__":
    B, C, H, W = 8, 4, 16, 16
    D = 16                 # latent dim
    K = 3                  # num_inv_equ
    DATASET_SIZE = 1000

    key = jax.random.PRNGKey(0)
    k_x, k_eps, k_par = jax.random.split(key, 3)

    x = jax.random.normal(k_x, (B, C, H, W), jnp.float32)
    eps = jax.random.normal(k_eps, (B, D), jnp.float32)
    params = make_params(k_par, C * H * W, D, C * H * W, K)

    out = mipet_betatcvae_forward(
        x, eps, params, num_inv_equ=K, dataset_size=DATASET_SIZE)
    out = jax.block_until_ready(out)

    result, enc_output, new_output = out
    assert new_output[0].shape == (B, C, H, W)
    assert enc_output[0].shape == (B, D)
    for v in result["obj"].values():
        assert v.shape == (1,)
        assert bool(jnp.all(jnp.isfinite(v)))
    print("KERNEL_OK")
</pallas_src>

<mosaic_0001>
module attributes {stable_mosaic.version = 11 : i64} {
  func.func @kernel(%arg0: memref<8x1024xf32, #tpu.memory_space<vmem>>, %arg1: memref<8x16xf32, #tpu.memory_space<vmem>>, %arg2: memref<1024x32xf32, #tpu.memory_space<vmem>>, %arg3: memref<1x32xf32, #tpu.memory_space<vmem>>, %arg4: memref<8x8xf32, #tpu.memory_space<vmem>>, %arg5: memref<16x96xf32, #tpu.memory_space<vmem>>, %arg6: memref<1x96xf32, #tpu.memory_space<vmem>>, %arg7: memref<16x1024xf32, #tpu.memory_space<vmem>>, %arg8: memref<1x1024xf32, #tpu.memory_space<vmem>>, %arg9: memref<8x1024xf32, #tpu.memory_space<vmem>>, %arg10: memref<8x128xf32, #tpu.memory_space<vmem>>) attributes {dimension_semantics = [], scalar_prefetch = 0 : i64, scratch_operands = 0 : i64, tpu.core_type = #tpu.core_type<tc>} {
    %c0 = arith.constant 0 : index
    %c0_0 = arith.constant 0 : index
    %0 = vector.load %arg0[%c0, %c0_0] : memref<8x1024xf32, #tpu.memory_space<vmem>>, vector<8x1024xf32>
    %c0_1 = arith.constant 0 : index
    %c0_2 = arith.constant 0 : index
    %1 = vector.load %arg1[%c0_1, %c0_2] : memref<8x16xf32, #tpu.memory_space<vmem>>, vector<8x16xf32>
    %c0_3 = arith.constant 0 : index
    %c0_4 = arith.constant 0 : index
    %2 = vector.load %arg2[%c0_3, %c0_4] : memref<1024x32xf32, #tpu.memory_space<vmem>>, vector<1024x32xf32>
    %cst = arith.constant dense<0.000000e+00> : vector<8x32xf32>
    %3 = tpu.matmul %0, %2, %cst {dimension_numbers = #tpu.dot_dimension_numbers<[1], [0], [0], [1], [0, 0, 1, 1], [], []>} : vector<8x1024xf32>, vector<1024x32xf32>, vector<8x32xf32> -> vector<8x32xf32>
    %c0_5 = arith.constant 0 : index
    %c0_6 = arith.constant 0 : index
    %4 = vector.load %arg3[%c0_5, %c0_6] : memref<1x32xf32, #tpu.memory_space<vmem>>, vector<1x32xf32>
    %5 = vector.broadcast %4 : vector<1x32xf32> to vector<8x32xf32>
    %6 = arith.addf %3, %5 : vector<8x32xf32>
    %7 = vector.extract_strided_slice %6 {offsets = [0, 0], sizes = [8, 16], strides = [1, 1]} : vector<8x32xf32> to vector<8x16xf32>
    %8 = vector.extract_strided_slice %6 {offsets = [0, 16], sizes = [8, 16], strides = [1, 1]} : vector<8x32xf32> to vector<8x16xf32>
    %cst_7 = arith.constant 5.000000e-01 : f32
    %9 = vector.broadcast %cst_7 : f32 to vector<8x16xf32>
    %10 = arith.mulf %9, %8 : vector<8x16xf32>
    %11 = math.exp %10 : vector<8x16xf32>
    %12 = arith.mulf %1, %11 : vector<8x16xf32>
    %13 = arith.addf %7, %12 : vector<8x16xf32>
    %cst_8 = arith.constant 1.83787704 : f32
    %14 = vector.broadcast %cst_8 : f32 to vector<8x16xf32>
    %15 = arith.addf %14, %8 : vector<8x16xf32>
    %cst_9 = arith.constant -5.000000e-01 : f32
    %16 = vector.broadcast %cst_9 : f32 to vector<8x16xf32>
    %17 = arith.mulf %16, %15 : vector<8x16xf32>
    %18 = arith.subf %13, %7 : vector<8x16xf32>
    %19 = arith.mulf %18, %18 : vector<8x16xf32>
    %cst_10 = arith.constant 5.000000e-01 : f32
    %20 = vector.broadcast %cst_10 : f32 to vector<8x16xf32>
    %21 = arith.mulf %20, %19 : vector<8x16xf32>
    %cst_11 = arith.constant 0.000000e+00 : f32
    %22 = vector.broadcast %cst_11 : f32 to vector<8x16xf32>
    %23 = arith.subf %22, %8 : vector<8x16xf32>
    %24 = math.exp %23 : vector<8x16xf32>
    %25 = arith.mulf %21, %24 : vector<8x16xf32>
    %26 = arith.subf %17, %25 : vector<8x16xf32>
    %cst_12 = arith.constant dense<0.000000e+00> : vector<8xf32>
    %27 = vector.multi_reduction <add>, %26, %cst_12 [1] : vector<8x16xf32> to vector<8xf32>
    %28 = vector.shape_cast %27 : vector<8xf32> to vector<8x1xf32>
    %cst_13 = arith.constant 5.000000e-01 : f32
    %29 = vector.broadcast %cst_13 : f32 to vector<8x16xf32>
    %30 = arith.mulf %29, %13 : vector<8x16xf32>
    %31 = arith.mulf %30, %13 : vector<8x16xf32>
    %cst_14 = arith.constant -0.918938517 : f32
    %32 = vector.broadcast %cst_14 : f32 to vector<8x16xf32>
    %33 = arith.subf %32, %31 : vector<8x16xf32>
    %cst_15 = arith.constant dense<0.000000e+00> : vector<8xf32>
    %34 = vector.multi_reduction <add>, %33, %cst_15 [1] : vector<8x16xf32> to vector<8xf32>
    %35 = vector.shape_cast %34 : vector<8xf32> to vector<8x1xf32>
    %36 = vector.shape_cast %13 : vector<8x16xf32> to vector<8x1x16xf32>
    %37 = vector.shape_cast %7 : vector<8x16xf32> to vector<1x8x16xf32>
    %38 = vector.shape_cast %8 : vector<8x16xf32> to vector<1x8x16xf32>
    %cst_16 = arith.constant 1.83787704 : f32
    %39 = vector.broadcast %cst_16 : f32 to vector<1x8x16xf32>
    %40 = arith.addf %39, %38 : vector<1x8x16xf32>
    %cst_17 = arith.constant -5.000000e-01 : f32
    %41 = vector.broadcast %cst_17 : f32 to vector<1x8x16xf32>
    %42 = arith.mulf %41, %40 : vector<1x8x16xf32>
    %43 = vector.broadcast %36 : vector<8x1x16xf32> to vector<8x8x16xf32>
    %44 = vector.broadcast %37 : vector<1x8x16xf32> to vector<8x8x16xf32>
    %45 = arith.subf %43, %44 : vector<8x8x16xf32>
    %46 = arith.mulf %45, %45 : vector<8x8x16xf32>
    %cst_18 = arith.constant 5.000000e-01 : f32
    %47 = vector.broadcast %cst_18 : f32 to vector<8x8x16xf32>
    %48 = arith.mulf %47, %46 : vector<8x8x16xf32>
    %cst_19 = arith.constant 0.000000e+00 : f32
    %49 = vector.broadcast %cst_19 : f32 to vector<1x8x16xf32>
    %50 = arith.subf %49, %38 : vector<1x8x16xf32>
    %51 = math.exp %50 : vector<1x8x16xf32>
    %52 = vector.broadcast %51 : vector<1x8x16xf32> to vector<8x8x16xf32>
    %53 = arith.mulf %48, %52 : vector<8x8x16xf32>
    %54 = vector.broadcast %42 : vector<1x8x16xf32> to vector<8x8x16xf32>
    %55 = arith.subf %54, %53 : vector<8x8x16xf32>
    %c0_20 = arith.constant 0 : index
    %c0_21 = arith.constant 0 : index
    %56 = vector.load %arg4[%c0_20, %c0_21] : memref<8x8xf32, #tpu.memory_space<vmem>>, vector<8x8xf32>
    %57 = vector.shape_cast %56 : vector<8x8xf32> to vector<8x8x1xf32>
    %58 = vector.broadcast %57 : vector<8x8x1xf32> to vector<8x8x16xf32>
    %59 = arith.addf %55, %58 : vector<8x8x16xf32>
    %cst_22 = arith.constant dense<0xFF800000> : vector<8x16xf32>
    %60 = vector.multi_reduction <maximumf>, %59, %cst_22 [1] : vector<8x8x16xf32> to vector<8x16xf32>
    %61 = vector.shape_cast %60 : vector<8x16xf32> to vector<8x1x16xf32>
    %62 = vector.broadcast %61 : vector<8x1x16xf32> to vector<8x8x16xf32>
    %63 = arith.subf %59, %62 : vector<8x8x16xf32>
    %64 = math.exp %63 : vector<8x8x16xf32>
    %cst_23 = arith.constant dense<0.000000e+00> : vector<8x16xf32>
    %65 = vector.multi_reduction <add>, %64, %cst_23 [1] : vector<8x8x16xf32> to vector<8x16xf32>
    %66 = vector.shape_cast %65 : vector<8x16xf32> to vector<8x1x16xf32>
    %67 = math.log %66 : vector<8x1x16xf32>
    %68 = arith.addf %61, %67 : vector<8x1x16xf32>
    %69 = vector.shape_cast %68 : vector<8x1x16xf32> to vector<8x16xf32>
    %cst_24 = arith.constant dense<0.000000e+00> : vector<8xf32>
    %70 = vector.multi_reduction <add>, %69, %cst_24 [1] : vector<8x16xf32> to vector<8xf32>
    %71 = vector.shape_cast %70 : vector<8xf32> to vector<8x1xf32>
    %cst_25 = arith.constant dense<0.000000e+00> : vector<8x8xf32>
    %72 = vector.multi_reduction <add>, %59, %cst_25 [2] : vector<8x8x16xf32> to vector<8x8xf32>
    %cst_26 = arith.constant dense<0xFF800000> : vector<8xf32>
    %73 = vector.multi_reduction <maximumf>, %72, %cst_26 [1] : vector<8x8xf32> to vector<8xf32>
    %74 = vector.shape_cast %73 : vector<8xf32> to vector<8x1xf32>
    %75 = vector.broadcast %74 : vector<8x1xf32> to vector<8x8xf32>
    %76 = arith.subf %72, %75 : vector<8x8xf32>
    %77 = math.exp %76 : vector<8x8xf32>
    %cst_27 = arith.constant dense<0.000000e+00> : vector<8xf32>
    %78 = vector.multi_reduction <add>, %77, %cst_27 [1] : vector<8x8xf32> to vector<8xf32>
    %79 = vector.shape_cast %78 : vector<8xf32> to vector<8x1xf32>
    %80 = math.log %79 : vector<8x1xf32>
    %81 = arith.addf %74, %80 : vector<8x1xf32>
    %cst_28 = arith.constant 1.000000e+00 : f32
    %82 = vector.broadcast %cst_28 : f32 to vector<8x16xf32>
    %83 = arith.addf %82, %8 : vector<8x16xf32>
    %84 = arith.mulf %7, %7 : vector<8x16xf32>
    %85 = arith.subf %83, %84 : vector<8x16xf32>
    %86 = math.exp %8 : vector<8x16xf32>
    %87 = arith.subf %85, %86 : vector<8x16xf32>
    %cst_29 = arith.constant dense<0.000000e+00> : vector<8xf32>
    %88 = vector.multi_reduction <add>, %87, %cst_29 [1] : vector<8x16xf32> to vector<8xf32>
    %89 = vector.shape_cast %88 : vector<8xf32> to vector<8x1xf32>
    %cst_30 = arith.constant -5.000000e-01 : f32
    %90 = vector.broadcast %cst_30 : f32 to vector<8x1xf32>
    %91 = arith.mulf %90, %89 : vector<8x1xf32>
    %c0_31 = arith.constant 0 : index
    %c0_32 = arith.constant 0 : index
    %92 = vector.load %arg5[%c0_31, %c0_32] : memref<16x96xf32, #tpu.memory_space<vmem>>, vector<16x96xf32>
    %cst_33 = arith.constant dense<0.000000e+00> : vector<8x96xf32>
    %93 = tpu.matmul %13, %92, %cst_33 {dimension_numbers = #tpu.dot_dimension_numbers<[1], [0], [0], [1], [0, 0, 1, 1], [], []>} : vector<8x16xf32>, vector<16x96xf32>, vector<8x96xf32> -> vector<8x96xf32>
    %c0_34 = arith.constant 0 : index
    %c0_35 = arith.constant 0 : index
    %94 = vector.load %arg6[%c0_34, %c0_35] : memref<1x96xf32, #tpu.memory_space<vmem>>, vector<1x96xf32>
    %95 = vector.broadcast %94 : vector<1x96xf32> to vector<8x96xf32>
    %96 = arith.addf %93, %95 : vector<8x96xf32>
    %cst_36 = arith.constant 0.000000e+00 : f32
    %97 = vector.broadcast %cst_36 : f32 to vector<8x1xf32>
    %cst_37 = arith.constant 0.000000e+00 : f32
    %98 = vector.broadcast %cst_37 : f32 to vector<8x1xf32>
    %cst_38 = arith.constant 0.000000e+00 : f32
    %99 = vector.broadcast %cst_38 : f32 to vector<8x16xf32>
    %100 = vector.extract_strided_slice %96 {offsets = [0, 0], sizes = [8, 16], strides = [1, 1]} : vector<8x96xf32> to vector<8x16xf32>
    %101 = vector.extract_strided_slice %96 {offsets = [0, 16], sizes = [8, 16], strides = [1, 1]} : vector<8x96xf32> to vector<8x16xf32>
    %cst_39 = arith.constant 5.000000e-01 : f32
    %102 = vector.broadcast %cst_39 : f32 to vector<8x16xf32>
    %103 = arith.mulf %102, %101 : vector<8x16xf32>
    %104 = math.exp %103 : vector<8x16xf32>
    %105 = arith.mulf %1, %104 : vector<8x16xf32>
    %106 = arith.addf %100, %105 : vector<8x16xf32>
    %cst_40 = arith.constant 1.000000e+00 : f32
    %107 = vector.broadcast %cst_40 : f32 to vector<8x16xf32>
    %108 = arith.addf %107, %101 : vector<8x16xf32>
    %109 = arith.mulf %100, %100 : vector<8x16xf32>
    %110 = arith.subf %108, %109 : vector<8x16xf32>
    %111 = math.exp %101 : vector<8x16xf32>
    %112 = arith.subf %110, %111 : vector<8x16xf32>
    %cst_41 = arith.constant -5.000000e-01 : f32
    %113 = vector.broadcast %cst_41 : f32 to vector<8x16xf32>
    %114 = arith.mulf %113, %112 : vector<8x16xf32>
    %cst_42 = arith.constant dense<0.000000e+00> : vector<8xf32>
    %115 = vector.multi_reduction <add>, %114, %cst_42 [1] : vector<8x16xf32> to vector<8xf32>
    %116 = vector.shape_cast %115 : vector<8xf32> to vector<8x1xf32>
    %117 = arith.addf %97, %116 : vector<8x1xf32>
    %118 = arith.subf %106, %13 : vector<8x16xf32>
    %119 = arith.mulf %118, %118 : vector<8x16xf32>
    %cst_43 = arith.constant dense<0.000000e+00> : vector<8xf32>
    %120 = vector.multi_reduction <add>, %119, %cst_43 [1] : vector<8x16xf32> to vector<8xf32>
    %121 = vector.shape_cast %120 : vector<8xf32> to vector<8x1xf32>
    %cst_44 = arith.constant 1.600000e+01 : f32
    %122 = vector.broadcast %cst_44 : f32 to vector<8x1xf32>
    %123 = arith.divf %121, %122 : vector<8x1xf32>
    %124 = arith.addf %98, %123 : vector<8x1xf32>
    %125 = arith.addf %99, %106 : vector<8x16xf32>
    %126 = vector.extract_strided_slice %96 {offsets = [0, 32], sizes = [8, 16], strides = [1, 1]} : vector<8x96xf32> to vector<8x16xf32>
    %127 = vector.extract_strided_slice %96 {offsets = [0, 48], sizes = [8, 16], strides = [1, 1]} : vector<8x96xf32> to vector<8x16xf32>
    %cst_45 = arith.constant 5.000000e-01 : f32
    %128 = vector.broadcast %cst_45 : f32 to vector<8x16xf32>
    %129 = arith.mulf %128, %127 : vector<8x16xf32>
    %130 = math.exp %129 : vector<8x16xf32>
    %131 = arith.mulf %1, %130 : vector<8x16xf32>
    %132 = arith.addf %126, %131 : vector<8x16xf32>
    %cst_46 = arith.constant 1.000000e+00 : f32
    %133 = vector.broadcast %cst_46 : f32 to vector<8x16xf32>
    %134 = arith.addf %133, %127 : vector<8x16xf32>
    %135 = arith.mulf %126, %126 : vector<8x16xf32>
    %136 = arith.subf %134, %135 : vector<8x16xf32>
    %137 = math.exp %127 : vector<8x16xf32>
    %138 = arith.subf %136, %137 : vector<8x16xf32>
    %cst_47 = arith.constant -5.000000e-01 : f32
    %139 = vector.broadcast %cst_47 : f32 to vector<8x16xf32>
    %140 = arith.mulf %139, %138 : vector<8x16xf32>
    %cst_48 = arith.constant dense<0.000000e+00> : vector<8xf32>
    %141 = vector.multi_reduction <add>, %140, %cst_48 [1] : vector<8x16xf32> to vector<8xf32>
    %142 = vector.shape_cast %141 : vector<8xf32> to vector<8x1xf32>
    %143 = arith.addf %117, %142 : vector<8x1xf32>
    %144 = arith.subf %132, %13 : vector<8x16xf32>
    %145 = arith.mulf %144, %144 : vector<8x16xf32>
    %cst_49 = arith.constant dense<0.000000e+00> : vector<8xf32>
    %146 = vector.multi_reduction <add>, %145, %cst_49 [1] : vector<8x16xf32> to vector<8xf32>
    %147 = vector.shape_cast %146 : vector<8xf32> to vector<8x1xf32>
    %cst_50 = arith.constant 1.600000e+01 : f32
    %148 = vector.broadcast %cst_50 : f32 to vector<8x1xf32>
    %149 = arith.divf %147, %148 : vector<8x1xf32>
    %150 = arith.addf %124, %149 : vector<8x1xf32>
    %151 = arith.addf %125, %132 : vector<8x16xf32>
    %152 = vector.extract_strided_slice %96 {offsets = [0, 64], sizes = [8, 16], strides = [1, 1]} : vector<8x96xf32> to vector<8x16xf32>
    %153 = vector.extract_strided_slice %96 {offsets = [0, 80], sizes = [8, 16], strides = [1, 1]} : vector<8x96xf32> to vector<8x16xf32>
    %cst_51 = arith.constant 5.000000e-01 : f32
    %154 = vector.broadcast %cst_51 : f32 to vector<8x16xf32>
    %155 = arith.mulf %154, %153 : vector<8x16xf32>
    %156 = math.exp %155 : vector<8x16xf32>
    %157 = arith.mulf %1, %156 : vector<8x16xf32>
    %158 = arith.addf %152, %157 : vector<8x16xf32>
    %cst_52 = arith.constant 1.000000e+00 : f32
    %159 = vector.broadcast %cst_52 : f32 to vector<8x16xf32>
    %160 = arith.addf %159, %153 : vector<8x16xf32>
    %161 = arith.mulf %152, %152 : vector<8x16xf32>
    %162 = arith.subf %160, %161 : vector<8x16xf32>
    %163 = math.exp %153 : vector<8x16xf32>
    %164 = arith.subf %162, %163 : vector<8x16xf32>
    %cst_53 = arith.constant -5.000000e-01 : f32
    %165 = vector.broadcast %cst_53 : f32 to vector<8x16xf32>
    %166 = arith.mulf %165, %164 : vector<8x16xf32>
    %cst_54 = arith.constant dense<0.000000e+00> : vector<8xf32>
    %167 = vector.multi_reduction <add>, %166, %cst_54 [1] : vector<8x16xf32> to vector<8xf32>
    %168 = vector.shape_cast %167 : vector<8xf32> to vector<8x1xf32>
    %169 = arith.addf %143, %168 : vector<8x1xf32>
    %170 = arith.subf %158, %13 : vector<8x16xf32>
    %171 = arith.mulf %170, %170 : vector<8x16xf32>
    %cst_55 = arith.constant dense<0.000000e+00> : vector<8xf32>
    %172 = vector.multi_reduction <add>, %171, %cst_55 [1] : vector<8x16xf32> to vector<8xf32>
    %173 = vector.shape_cast %172 : vector<8xf32> to vector<8x1xf32>
    %cst_56 = arith.constant 1.600000e+01 : f32
    %174 = vector.broadcast %cst_56 : f32 to vector<8x1xf32>
    %175 = arith.divf %173, %174 : vector<8x1xf32>
    %176 = arith.addf %150, %175 : vector<8x1xf32>
    %177 = arith.addf %151, %158 : vector<8x16xf32>
    %cst_57 = arith.constant 0.333333343 : f32
    %178 = vector.broadcast %cst_57 : f32 to vector<8x16xf32>
    %179 = arith.mulf %177, %178 : vector<8x16xf32>
    %c0_58 = arith.constant 0 : index
    %c0_59 = arith.constant 0 : index
    %180 = vector.load %arg7[%c0_58, %c0_59] : memref<16x1024xf32, #tpu.memory_space<vmem>>, vector<16x1024xf32>
    %cst_60 = arith.constant dense<0.000000e+00> : vector<8x1024xf32>
    %181 = tpu.matmul %179, %180, %cst_60 {dimension_numbers = #tpu.dot_dimension_numbers<[1], [0], [0], [1], [0, 0, 1, 1], [], []>} : vector<8x16xf32>, vector<16x1024xf32>, vector<8x1024xf32> -> vector<8x1024xf32>
    %c0_61 = arith.constant 0 : index
    %c0_62 = arith.constant 0 : index
    %182 = vector.load %arg8[%c0_61, %c0_62] : memref<1x1024xf32, #tpu.memory_space<vmem>>, vector<1x1024xf32>
    %183 = vector.broadcast %182 : vector<1x1024xf32> to vector<8x1024xf32>
    %184 = arith.addf %181, %183 : vector<8x1024xf32>
    %185 = arith.subf %184, %0 : vector<8x1024xf32>
    %186 = arith.mulf %185, %185 : vector<8x1024xf32>
    %cst_63 = arith.constant dense<0.000000e+00> : vector<8xf32>
    %187 = vector.multi_reduction <add>, %186, %cst_63 [1] : vector<8x1024xf32> to vector<8xf32>
    %188 = vector.shape_cast %187 : vector<8xf32> to vector<8x1xf32>
    %c0_64 = arith.constant 0 : index
    %c0_65 = arith.constant 0 : index
    %189 = vector.load %arg9[%c0_64, %c0_65] : memref<8x1024xf32, #tpu.memory_space<vmem>>, vector<8x1024xf32>
    tpu.vector_store %arg9[%c0_64, %c0_65], %184 {strides = array<i32>} : memref<8x1024xf32, #tpu.memory_space<vmem>>, vector<8x1024xf32>,
    %190 = tpu.concatenate %28, %35, %81, %71, %91, %169, %176, %188 in 1 : vector<8x1xf32>, vector<8x1xf32>, vector<8x1xf32>, vector<8x1xf32>, vector<8x1xf32>, vector<8x1xf32>, vector<8x1xf32>, vector<8x1xf32> -> vector<8x8xf32>
    %cst_66 = arith.constant 0.000000e+00 : f32
    %191 = vector.broadcast %cst_66 : f32 to vector<8x72xf32>
    %192 = tpu.concatenate %13, %7, %8, %190, %191 in 1 : vector<8x16xf32>, vector<8x16xf32>, vector<8x16xf32>, vector<8x8xf32>, vector<8x72xf32> -> vector<8x128xf32>
    %c0_67 = arith.constant 0 : index
    %c0_68 = arith.constant 0 : index
    %193 = vector.load %arg10[%c0_67, %c0_68] : memref<8x128xf32, #tpu.memory_space<vmem>>, vector<8x128xf32>
    tpu.vector_store %arg10[%c0_67, %c0_68], %192 {strides = array<i32>} : memref<8x128xf32, #tpu.memory_space<vmem>>, vector<8x128xf32>,
    return
  }
}

</mosaic_0001>

<llo_original>
// kernel: tpu_custom_call.1
$region0: #{tpu_custom_call.1}
  #allocation0 [shape = 'u32[]', space=smem, size = 0x4, offset = 0x4, fixed_abs, tag = 'smem constant byte address 0x4 - core index']
  #allocation1 [shape = 'u32[144,128]{1,0:T(1,128)}', space=vmem, size = 0x12000, scoped, tag = 'internal scratch']
  %s0 = inlined_call_operand.hbm [shape: f32[8,1024], index: 0, kind: input, shape index: {}]
  %s1 = inlined_call_operand.hbm [shape: f32[8,16], index: 1, kind: input, shape index: {}]
  %s2 = inlined_call_operand.hbm [shape: f32[1024,32], index: 2, kind: input, shape index: {}]
  %s3 = inlined_call_operand.hbm [shape: f32[1,32], index: 3, kind: input, shape index: {}]
  %s4 = inlined_call_operand.hbm [shape: f32[8,8], index: 4, kind: input, shape index: {}]
  %s5 = inlined_call_operand.hbm [shape: f32[16,96], index: 5, kind: input, shape index: {}]
  %s6 = inlined_call_operand.hbm [shape: f32[1,96], index: 6, kind: input, shape index: {}]
  %s7 = inlined_call_operand.hbm [shape: f32[16,1024], index: 7, kind: input, shape index: {}]
  %s8 = inlined_call_operand.hbm [shape: f32[1,1024], index: 8, kind: input, shape index: {}]
  %s9 = inlined_call_operand.hbm [shape: f32[8,1024], index: 9, kind: output, shape index: {0}]
  %s10 = inlined_call_operand.hbm [shape: f32[8,128], index: 10, kind: output, shape index: {1}]
  %11 = xla_tuple %s9, %s10
  %s12 = sld [smem:[#allocation0]]
  $region90: #{tpu_custom_call.1} parent=0
    _
  %s14 = ssub.s32 1, %s12
  %s15 = scalar_select 0, %s14, %s12
  $region1: #{tpu_custom_call.1} parent=0
    #allocation2 [shape = 'u8[32768]{0}', space=vmem, size = 0x8000, scoped, tag = 'input window, operand 0, single buffered']
    #allocation3 [shape = 's32[1]{0}', space=sflag, size = 0x4, scoped, tag = 'scoped memory for tpu_custom_call.1']
    #allocation4 [shape = 's32[1]{0}', space=sflag, size = 0x4, scoped, tag = 'scoped memory for tpu_custom_call.1']
    #allocation5 [shape = 'u8[4096]{0}', space=vmem, size = 0x1000, scoped, tag = 'input window, operand 1, single buffered']
    #allocation6 [shape = 's32[1]{0}', space=sflag, size = 0x4, scoped, tag = 'scoped memory for tpu_custom_call.1']
    #allocation7 [shape = 'u8[524288]{0}', space=vmem, size = 0x80000, scoped, tag = 'input window, operand 2, single buffered']
    #allocation8 [shape = 'u8[512]{0}', space=vmem, size = 0x400, scoped, tag = 'input window, operand 3, single buffered']
    #allocation9 [shape = 's32[1]{0}', space=sflag, size = 0x4, scoped, tag = 'scoped memory for tpu_custom_call.1']
    #allocation10 [shape = 'u8[4096]{0}', space=vmem, size = 0x1000, scoped, tag = 'input window, operand 4, single buffered']
    #allocation11 [shape = 'u8[8192]{0}', space=vmem, size = 0x2000, scoped, tag = 'input window, operand 5, single buffered']
    #allocation12 [shape = 's32[1]{0}', space=sflag, size = 0x4, scoped, tag = 'scoped memory for tpu_custom_call.1']
    #allocation13 [shape = 'u8[512]{0}', space=vmem, size = 0x400, scoped, tag = 'input window, operand 6, single buffered']
    #allocation14 [shape = 'u8[65536]{0}', space=vmem, size = 0x10000, scoped, tag = 'input window, operand 7, single buffered']
    #allocation15 [shape = 's32[1]{0}', space=sflag, size = 0x4, scoped, tag = 'scoped memory for tpu_custom_call.1']
    #allocation16 [shape = 'u8[4096]{0}', space=vmem, size = 0x1000, scoped, tag = 'input window, operand 8, single buffered']
    #allocation17 [shape = 'u8[32768]{0}', space=vmem, size = 0x8000, scoped, tag = 'output window, operand 0, single buffered']
    #allocation18 [shape = 'u8[4096]{0}', space=vmem, size = 0x1000, scoped, tag = 'output window, operand 1, single buffered']
    #allocation19 [shape = 's32[1]{0}', space=sflag, size = 0x4, scoped, tag = 'scoped memory for tpu_custom_call.1']
    %16 = vsyncpa [#allocation3], 0
    %17 = vsyncpa [#allocation6], 0
    %18 = vsyncpa [#allocation9], 0
    %19 = vsyncpa [#allocation12], 0
    %20 = vsyncpa [#allocation15], 0
    %21 = vsyncpa [#allocation4], 0
    %22 = vsyncpa [#allocation19], 0
    // Predicated region
    $region2: #{tpu_custom_call.1} parent=1 // pred_check
      _
    $region3: #{tpu_custom_call.1} parent=1 // pred_check_branch
      %24 = sbr.rel (0) target = $region5
    $region4: #{tpu_custom_call.1} parent=1 // pred_region
      %s26 = ssub.s32 1024, 1024
      %27 = vsyncadd [#allocation3], %s26
      %s29 = sshll.u32 [#allocation2], 4
      %s30 = int_to_ptr.vmem [resolvable:$true] %s29
      %32 = dma.hbm_to_vmem [thread:$0]  %s0, 1024, %s30, [#allocation3]
    $region5: #{tpu_custom_call.1} parent=1 // pred_fallthru
      _
    // Predicated region
    $region6: #{tpu_custom_call.1} parent=1 // pred_check
      _
    $region7: #{tpu_custom_call.1} parent=1 // pred_check_branch
      %34 = sbr.rel (0) target = $region9
    $region8: #{tpu_custom_call.1} parent=1 // pred_region
      %s36 = ssub.s32 128, 128
      %37 = vsyncadd [#allocation6], %s36
      %s39 = sshll.u32 [#allocation5], 4
      %s40 = int_to_ptr.vmem [resolvable:$true] %s39
      %42 = dma.hbm_to_vmem [thread:$0]  %s1, 128, %s40, [#allocation6]
    $region9: #{tpu_custom_call.1} parent=1 // pred_fallthru
      _
    // Predicated region
    $region10: #{tpu_custom_call.1} parent=1 // pred_check
      _
    $region11: #{tpu_custom_call.1} parent=1 // pred_check_branch
      %44 = sbr.rel (0) target = $region13
    $region12: #{tpu_custom_call.1} parent=1 // pred_region
      %s46 = ssub.s32 16384, 16384
      %47 = vsyncadd [#allocation6], %s46
      %s48 = sshll.u32 [#allocation7], 4
      %s49 = int_to_ptr.vmem [resolvable:$true] %s48
      %54 = dma.hbm_to_vmem [thread:$0]  %s2, 16384, %s49, [#allocation6], 128, 128, 8
    $region13: #{tpu_custom_call.1} parent=1 // pred_fallthru
      _
    // Predicated region
    $region14: #{tpu_custom_call.1} parent=1 // pred_check
      _
    $region15: #{tpu_custom_call.1} parent=1 // pred_check_branch
      %56 = sbr.rel (0) target = $region17
    $region16: #{tpu_custom_call.1} parent=1 // pred_region
      %s58 = ssub.s32 16, 16
      %59 = vsyncadd [#allocation9], %s58
      %s61 = sshll.u32 [#allocation8], 4
      %s62 = int_to_ptr.vmem [resolvable:$true] %s61
      %64 = dma.hbm_to_vmem [thread:$0]  %s3, 16, %s62, [#allocation9]
    $region17: #{tpu_custom_call.1} parent=1 // pred_fallthru
      _
    // Predicated region
    $region18: #{tpu_custom_call.1} parent=1 // pred_check
      _
    $region19: #{tpu_custom_call.1} parent=1 // pred_check_branch
      %66 = sbr.rel (0) target = $region21
    $region20: #{tpu_custom_call.1} parent=1 // pred_region
      %s68 = ssub.s32 128, 128
      %69 = vsyncadd [#allocation9], %s68
      %s71 = sshll.u32 [#allocation10], 4
      %s72 = int_to_ptr.vmem [resolvable:$true] %s71
      %74 = dma.hbm_to_vmem [thread:$0]  %s4, 128, %s72, [#allocation9]
    $region21: #{tpu_custom_call.1} parent=1 // pred_fallthru
      _
    // Predicated region
    $region22: #{tpu_custom_call.1} parent=1 // pred_check
      _
    $region23: #{tpu_custom_call.1} parent=1 // pred_check_branch
      %76 = sbr.rel (0) target = $region25
    $region24: #{tpu_custom_call.1} parent=1 // pred_region
      %s78 = ssub.s32 256, 256
      %79 = vsyncadd [#allocation12], %s78
      %s80 = sshll.u32 [#allocation11], 4
      %s81 = int_to_ptr.vmem [resolvable:$true] %s80
      %86 = dma.hbm_to_vmem [thread:$0]  %s5, 256, %s81, [#allocation12], 128, 128, 8
    $region25: #{tpu_custom_call.1} parent=1 // pred_fallthru
      _
    // Predicated region
    $region26: #{tpu_custom_call.1} parent=1 // pred_check
      _
    $region27: #{tpu_custom_call.1} parent=1 // pred_check_branch
      %88 = sbr.rel (0) target = $region29
    $region28: #{tpu_custom_call.1} parent=1 // pred_region
      %s90 = ssub.s32 16, 16
      %91 = vsyncadd [#allocation12], %s90
      %s93 = sshll.u32 [#allocation13], 4
      %s94 = int_to_ptr.vmem [resolvable:$true] %s93
      %96 = dma.hbm_to_vmem [thread:$0]  %s6, 16, %s94, [#allocation12]
    $region29: #{tpu_custom_call.1} parent=1 // pred_fallthru
      _
    // Predicated region
    $region30: #{tpu_custom_call.1} parent=1 // pred_check
      _
    $region31: #{tpu_custom_call.1} parent=1 // pred_check_branch
      %98 = sbr.rel (0) target = $region33
    $region32: #{tpu_custom_call.1} parent=1 // pred_region
      %s100 = ssub.s32 2048, 2048
      %101 = vsyncadd [#allocation15], %s100
      %s102 = sshll.u32 [#allocation14], 4
      %s103 = int_to_ptr.vmem [resolvable:$true] %s102
      %108 = dma.hbm_to_vmem [thread:$0]  %s7, 2048, %s103, [#allocation15], 1024, 1024, 64
    $region33: #{tpu_custom_call.1} parent=1 // pred_fallthru
      _
    // Predicated region
    $region34: #{tpu_custom_call.1} parent=1 // pred_check
      _
    $region35: #{tpu_custom_call.1} parent=1 // pred_check_branch
      %110 = sbr.rel (0) target = $region37
    $region36: #{tpu_custom_call.1} parent=1 // pred_region
      %s112 = ssub.s32 128, 128
      %113 = vsyncadd [#allocation15], %s112
      %s115 = sshll.u32 [#allocation16], 4
      %s116 = int_to_ptr.vmem [resolvable:$true] %s115
      %118 = dma.hbm_to_vmem [thread:$0]  %s8, 128, %s116, [#allocation15]
    $region37: #{tpu_custom_call.1} parent=1 // pred_fallthru
      _
    // Predicated region
    $region38: #{tpu_custom_call.1} parent=1 // pred_check
      _
    $region39: #{tpu_custom_call.1} parent=1 // pred_check_branch
      %120 = sbr.rel (0) target = $region41
    $region40: #{tpu_custom_call.1} parent=1 // pred_region
      %121 = dma.done [#allocation3], 1024
    $region41: #{tpu_custom_call.1} parent=1 // pred_fallthru
      _
    // Predicated region
    $region42: #{tpu_custom_call.1} parent=1 // pred_check
      _
    $region43: #{tpu_custom_call.1} parent=1 // pred_check_branch
      %123 = sbr.rel (0) target = $region45
    $region44: #{tpu_custom_call.1} parent=1 // pred_region
      %124 = dma.done [#allocation6], 128
    $region45: #{tpu_custom_call.1} parent=1 // pred_fallthru
      _
    // Predicated region
    $region46: #{tpu_custom_call.1} parent=1 // pred_check
      _
    $region47: #{tpu_custom_call.1} parent=1 // pred_check_branch
      %126 = sbr.rel (0) target = $region49
    $region48: #{tpu_custom_call.1} parent=1 // pred_region
      %127 = dma.done [#allocation6], 16384
    $region49: #{tpu_custom_call.1} parent=1 // pred_fallthru
      _
    // Predicated region
    $region50: #{tpu_custom_call.1} parent=1 // pred_check
      _
    $region51: #{tpu_custom_call.1} parent=1 // pred_check_branch
      %129 = sbr.rel (0) target = $region53
    $region52: #{tpu_custom_call.1} parent=1 // pred_region
      %130 = dma.done [#allocation9], 16
    $region53: #{tpu_custom_call.1} parent=1 // pred_fallthru
      _
    // Predicated region
    $region54: #{tpu_custom_call.1} parent=1 // pred_check
      _
    $region55: #{tpu_custom_call.1} parent=1 // pred_check_branch
      %132 = sbr.rel (0) target = $region57
    $region56: #{tpu_custom_call.1} parent=1 // pred_region
      %133 = dma.done [#allocation9], 128
    $region57: #{tpu_custom_call.1} parent=1 // pred_fallthru
      _
    // Predicated region
    $region58: #{tpu_custom_call.1} parent=1 // pred_check
      _
    $region59: #{tpu_custom_call.1} parent=1 // pred_check_branch
      %135 = sbr.rel (0) target = $region61
    $region60: #{tpu_custom_call.1} parent=1 // pred_region
      %136 = dma.done [#allocation12], 256
    $region61: #{tpu_custom_call.1} parent=1 // pred_fallthru
      _
    // Predicated region
    $region62: #{tpu_custom_call.1} parent=1 // pred_check
      _
    $region63: #{tpu_custom_call.1} parent=1 // pred_check_branch
      %138 = sbr.rel (0) target = $region65
    $region64: #{tpu_custom_call.1} parent=1 // pred_region
      %139 = dma.done [#allocation12], 16
    $region65: #{tpu_custom_call.1} parent=1 // pred_fallthru
      _
    // Predicated region
    $region66: #{tpu_custom_call.1} parent=1 // pred_check
      _
    $region67: #{tpu_custom_call.1} parent=1 // pred_check_branch
      %141 = sbr.rel (0) target = $region69
    $region68: #{tpu_custom_call.1} parent=1 // pred_region
      %142 = dma.done [#allocation15], 2048
    $region69: #{tpu_custom_call.1} parent=1 // pred_fallthru
      _
    // Predicated region
    $region70: #{tpu_custom_call.1} parent=1 // pred_check
      _
    $region71: #{tpu_custom_call.1} parent=1 // pred_check_branch
      %144 = sbr.rel (0) target = $region73
    $region72: #{tpu_custom_call.1} parent=1 // pred_region
      %145 = dma.done [#allocation15], 128
    $region73: #{tpu_custom_call.1} parent=1 // pred_fallthru
      _
    %v146 = vld [vmem:[#allocation2] sm:$0xff]
    %v147 = vld [vmem:[#allocation2 + $0x8] sm:$0xff]
    %v148 = vld [vmem:[#allocation2 + $0x10] sm:$0xff]
    %v149 = vld [vmem:[#allocation2 + $0x18] sm:$0xff]
    %v150 = vld [vmem:[#allocation2 + $0x20] sm:$0xff]
    %v151 = vld [vmem:[#allocation2 + $0x28] sm:$0xff]
    %v152 = vld [vmem:[#allocation2 + $0x30] sm:$0xff]
    %v153 = vld [vmem:[#allocation2 + $0x38] sm:$0xff]
    %v154 = vld [vmem:[#allocation5] sm:$0xff]
    %v155 = vld [vmem:[#allocation7] sm:$0xff]
    %v156 = vld [vmem:[#allocation7 + $0x8] sm:$0xff]
    %v157 = vld [vmem:[#allocation7 + $0x10] sm:$0xff]
    %v158 = vld [vmem:[#allocation7 + $0x18] sm:$0xff]
    %v159 = vld [vmem:[#allocation7 + $0x20] sm:$0xff]
    %v160 = vld [vmem:[#allocation7 + $0x28] sm:$0xff]
    %v161 = vld [vmem:[#allocation7 + $0x30] sm:$0xff]
    %v162 = vld [vmem:[#allocation7 + $0x38] sm:$0xff]
    %v163 = vld [vmem:[#allocation7 + $0x40] sm:$0xff]
    %v164 = vld [vmem:[#allocation7 + $0x48] sm:$0xff]
    %v165 = vld [vmem:[#allocation7 + $0x50] sm:$0xff]
    %v166 = vld [vmem:[#allocation7 + $0x58] sm:$0xff]
    %v167 = vld [vmem:[#allocation7 + $0x60] sm:$0xff]
    %v168 = vld [vmem:[#allocation7 + $0x68] sm:$0xff]
    %v169 = vld [vmem:[#allocation7 + $0x70] sm:$0xff]
    %v170 = vld [vmem:[#allocation7 + $0x78] sm:$0xff]
    %v171 = vld [vmem:[#allocation7 + $0x80] sm:$0xff]
    %v172 = vld [vmem:[#allocation7 + $0x88] sm:$0xff]
    %v173 = vld [vmem:[#allocation7 + $0x90] sm:$0xff]
    %v174 = vld [vmem:[#allocation7 + $0x98] sm:$0xff]
    %v175 = vld [vmem:[#allocation7 + $0xa0] sm:$0xff]
    %v176 = vld [vmem:[#allocation7 + $0xa8] sm:$0xff]
    %v177 = vld [vmem:[#allocation7 + $0xb0] sm:$0xff]
    %v178 = vld [vmem:[#allocation7 + $0xb8] sm:$0xff]
    %v179 = vld [vmem:[#allocation7 + $0xc0] sm:$0xff]
    %v180 = vld [vmem:[#allocation7 + $0xc8] sm:$0xff]
    %v181 = vld [vmem:[#allocation7 + $0xd0] sm:$0xff]
    %v182 = vld [vmem:[#allocation7 + $0xd8] sm:$0xff]
    %v183 = vld [vmem:[#allocation7 + $0xe0] sm:$0xff]
    %v184 = vld [vmem:[#allocation7 + $0xe8] sm:$0xff]
    %v185 = vld [vmem:[#allocation7 + $0xf0] sm:$0xff]
    %v186 = vld [vmem:[#allocation7 + $0xf8] sm:$0xff]
    %v187 = vld [vmem:[#allocation7 + $0x100] sm:$0xff]
    %v188 = vld [vmem:[#allocation7 + $0x108] sm:$0xff]
    %v189 = vld [vmem:[#allocation7 + $0x110] sm:$0xff]
    %v190 = vld [vmem:[#allocation7 + $0x118] sm:$0xff]
    %v191 = vld [vmem:[#allocation7 + $0x120] sm:$0xff]
    %v192 = vld [vmem:[#allocation7 + $0x128] sm:$0xff]
    %v193 = vld [vmem:[#allocation7 + $0x130] sm:$0xff]
    %v194 = vld [vmem:[#allocation7 + $0x138] sm:$0xff]
    %v195 = vld [vmem:[#allocation7 + $0x140] sm:$0xff]
    %v196 = vld [vmem:[#allocation7 + $0x148] sm:$0xff]
    %v197 = vld [vmem:[#allocation7 + $0x150] sm:$0xff]
    %v198 = vld [vmem:[#allocation7 + $0x158] sm:$0xff]
    %v199 = vld [vmem:[#allocation7 + $0x160] sm:$0xff]
    %v200 = vld [vmem:[#allocation7 + $0x168] sm:$0xff]
    %v201 = vld [vmem:[#allocation7 + $0x170] sm:$0xff]
    %v202 = vld [vmem:[#allocation7 + $0x178] sm:$0xff]
    %v203 = vld [vmem:[#allocation7 + $0x180] sm:$0xff]
    %v204 = vld [vmem:[#allocation7 + $0x188] sm:$0xff]
    %v205 = vld [vmem:[#allocation7 + $0x190] sm:$0xff]
    %v206 = vld [vmem:[#allocation7 + $0x198] sm:$0xff]
    %v207 = vld [vmem:[#allocation7 + $0x1a0] sm:$0xff]
    %v208 = vld [vmem:[#allocation7 + $0x1a8] sm:$0xff]
    %v209 = vld [vmem:[#allocation7 + $0x1b0] sm:$0xff]
    %v210 = vld [vmem:[#allocation7 + $0x1b8] sm:$0xff]
    %v211 = vld [vmem:[#allocation7 + $0x1c0] sm:$0xff]
    %v212 = vld [vmem:[#allocation7 + $0x1c8] sm:$0xff]
    %v213 = vld [vmem:[#allocation7 + $0x1d0] sm:$0xff]
    %v214 = vld [vmem:[#allocation7 + $0x1d8] sm:$0xff]
    %v215 = vld [vmem:[#allocation7 + $0x1e0] sm:$0xff]
    %v216 = vld [vmem:[#allocation7 + $0x1e8] sm:$0xff]
    %v217 = vld [vmem:[#allocation7 + $0x1f0] sm:$0xff]
    %v218 = vld [vmem:[#allocation7 + $0x1f8] sm:$0xff]
    %v219 = vld [vmem:[#allocation7 + $0x200] sm:$0xff]
    %v220 = vld [vmem:[#allocation7 + $0x208] sm:$0xff]
    %v221 = vld [vmem:[#allocation7 + $0x210] sm:$0xff]
    %v222 = vld [vmem:[#allocation7 + $0x218] sm:$0xff]
    %v223 = vld [vmem:[#allocation7 + $0x220] sm:$0xff]
    %v224 = vld [vmem:[#allocation7 + $0x228] sm:$0xff]
    %v225 = vld [vmem:[#allocation7 + $0x230] sm:$0xff]
    %v226 = vld [vmem:[#allocation7 + $0x238] sm:$0xff]
    %v227 = vld [vmem:[#allocation7 + $0x240] sm:$0xff]
    %v228 = vld [vmem:[#allocation7 + $0x248] sm:$0xff]
    %v229 = vld [vmem:[#allocation7 + $0x250] sm:$0xff]
    %v230 = vld [vmem:[#allocation7 + $0x258] sm:$0xff]
    %v231 = vld [vmem:[#allocation7 + $0x260] sm:$0xff]
    %v232 = vld [vmem:[#allocation7 + $0x268] sm:$0xff]
    %v233 = vld [vmem:[#allocation7 + $0x270] sm:$0xff]
    %v234 = vld [vmem:[#allocation7 + $0x278] sm:$0xff]
    %v235 = vld [vmem:[#allocation7 + $0x280] sm:$0xff]
    %v236 = vld [vmem:[#allocation7 + $0x288] sm:$0xff]
    %v237 = vld [vmem:[#allocation7 + $0x290] sm:$0xff]
    %v238 = vld [vmem:[#allocation7 + $0x298] sm:$0xff]
    %v239 = vld [vmem:[#allocation7 + $0x2a0] sm:$0xff]
    %v240 = vld [vmem:[#allocation7 + $0x2a8] sm:$0xff]
    %v241 = vld [vmem:[#allocation7 + $0x2b0] sm:$0xff]
    %v242 = vld [vmem:[#allocation7 + $0x2b8] sm:$0xff]
    %v243 = vld [vmem:[#allocation7 + $0x2c0] sm:$0xff]
    %v244 = vld [vmem:[#allocation7 + $0x2c8] sm:$0xff]
    %v245 = vld [vmem:[#allocation7 + $0x2d0] sm:$0xff]
    %v246 = vld [vmem:[#allocation7 + $0x2d8] sm:$0xff]
    %v247 = vld [vmem:[#allocation7 + $0x2e0] sm:$0xff]
    %v248 = vld [vmem:[#allocation7 + $0x2e8] sm:$0xff]
    %v249 = vld [vmem:[#allocation7 + $0x2f0] sm:$0xff]
    %v250 = vld [vmem:[#allocation7 + $0x2f8] sm:$0xff]
    %v251 = vld [vmem:[#allocation7 + $0x300] sm:$0xff]
    %v252 = vld [vmem:[#allocation7 + $0x308] sm:$0xff]
    %v253 = vld [vmem:[#allocation7 + $0x310] sm:$0xff]
    %v254 = vld [vmem:[#allocation7 + $0x318] sm:$0xff]
    %v255 = vld [vmem:[#allocation7 + $0x320] sm:$0xff]
    %v256 = vld [vmem:[#allocation7 + $0x328] sm:$0xff]
    %v257 = vld [vmem:[#allocation7 + $0x330] sm:$0xff]
    %v258 = vld [vmem:[#allocation7 + $0x338] sm:$0xff]
    %v259 = vld [vmem:[#allocation7 + $0x340] sm:$0xff]
    %v260 = vld [vmem:[#allocation7 + $0x348] sm:$0xff]
    %v261 = vld [vmem:[#allocation7 + $0x350] sm:$0xff]
    %v262 = vld [vmem:[#allocation7 + $0x358] sm:$0xff]
    %v263 = vld [vmem:[#allocation7 + $0x360] sm:$0xff]
    %v264 = vld [vmem:[#allocation7 + $0x368] sm:$0xff]
    %v265 = vld [vmem:[#allocation7 + $0x370] sm:$0xff]
    %v266 = vld [vmem:[#allocation7 + $0x378] sm:$0xff]
    %v267 = vld [vmem:[#allocation7 + $0x380] sm:$0xff]
    %v268 = vld [vmem:[#allocation7 + $0x388] sm:$0xff]
    %v269 = vld [vmem:[#allocation7 + $0x390] sm:$0xff]
    %v270 = vld [vmem:[#allocation7 + $0x398] sm:$0xff]
    %v271 = vld [vmem:[#allocation7 + $0x3a0] sm:$0xff]
    %v272 = vld [vmem:[#allocation7 + $0x3a8] sm:$0xff]
    %v273 = vld [vmem:[#allocation7 + $0x3b0] sm:$0xff]
    %v274 = vld [vmem:[#allocation7 + $0x3b8] sm:$0xff]
    %v275 = vld [vmem:[#allocation7 + $0x3c0] sm:$0xff]
    %v276 = vld [vmem:[#allocation7 + $0x3c8] sm:$0xff]
    %v277 = vld [vmem:[#allocation7 + $0x3d0] sm:$0xff]
    %v278 = vld [vmem:[#allocation7 + $0x3d8] sm:$0xff]
    %v279 = vld [vmem:[#allocation7 + $0x3e0] sm:$0xff]
    %v280 = vld [vmem:[#allocation7 + $0x3e8] sm:$0xff]
    %v281 = vld [vmem:[#allocation7 + $0x3f0] sm:$0xff]
    %v282 = vld [vmem:[#allocation7 + $0x3f8] sm:$0xff]
    %v283 = vld [vmem:[#allocation8] sm:$0x1]
    %v285 = vlaneseq
    %v286 = vshrl.u32 %v285, 7
    %v287 = vsub.s32 0, %v286
    %v288 = vrot.slane %v283, %v287
    %290 = vmatprep.subr.mxu0 0.0
    %291 = vmatpush1.msra.mxu0 %v155
    %292 = vmatprep.subr.mxu0 0.0
    %293 = vmatpush1.msra.mxu0 %v156
    %294 = vmatprep.subr.mxu0 0.0
    %295 = vmatpush1.msra.mxu0 %v157
    %296 = vmatprep.subr.mxu0 0.0
    %297 = vmatpush1.msra.mxu0 %v158
    %298 = vmatprep.subr.mxu0 0.0
    %299 = vmatpush1.msra.mxu0 %v159
    %300 = vmatprep.subr.mxu0 0.0
    %301 = vmatpush1.msra.mxu0 %v160
    %302 = vmatprep.subr.mxu0 0.0
    %303 = vmatpush1.msra.mxu0 %v161
    %304 = vmatprep.subr.mxu0 0.0
    %305 = vmatpush1.msra.mxu0 %v162
    %306 = vmatprep.subr.mxu0 0.0
    %307 = vmatpush1.msra.mxu0 %v163
    %308 = vmatprep.subr.mxu0 0.0
    %309 = vmatpush1.msra.mxu0 %v164
    %310 = vmatprep.subr.mxu0 0.0
    %311 = vmatpush1.msra.mxu0 %v165
    %312 = vmatprep.subr.mxu0 0.0
    %313 = vmatpush1.msra.mxu0 %v166
    %314 = vmatprep.subr.mxu0 0.0
    %315 = vmatpush1.msra.mxu0 %v167
    %316 = vmatprep.subr.mxu0 0.0
    %317 = vmatpush1.msra.mxu0 %v168
    %318 = vmatprep.subr.mxu0 0.0
    %319 = vmatpush1.msra.mxu0 %v169
    %320 = vmatprep.subr.mxu0 0.0
    %321 = vmatpush1.msra.mxu0 %v170
    %322 = vmatprep.subr.mxu0 0.0
    %323 = vmatpush1.msra.mxu0 %v171
    %324 = vmatprep.subr.mxu0 0.0
    %325 = vmatpush1.msra.mxu0 %v172
    %326 = vmatprep.subr.mxu0 0.0
    %327 = vmatpush1.msra.mxu0 %v173
    %328 = vmatprep.subr.mxu0 0.0
    %329 = vmatpush1.msra.mxu0 %v174
    %330 = vmatprep.subr.mxu0 0.0
    %331 = vmatpush1.msra.mxu0 %v175
    %332 = vmatprep.subr.mxu0 0.0
    %333 = vmatpush1.msra.mxu0 %v176
    %334 = vmatprep.subr.mxu0 0.0
    %335 = vmatpush1.msra.mxu0 %v177
    %336 = vmatprep.subr.mxu0 0.0
    %337 = vmatpush1.msra.mxu0 %v178
    %338 = vmatprep.subr.mxu0 0.0
    %339 = vmatpush1.msra.mxu0 %v179
    %340 = vmatprep.subr.mxu0 0.0
    %341 = vmatpush1.msra.mxu0 %v180
    %342 = vmatprep.subr.mxu0 0.0
    %343 = vmatpush1.msra.mxu0 %v181
    %344 = vmatprep.subr.mxu0 0.0
    %345 = vmatpush1.msra.mxu0 %v182
    %346 = vmatprep.subr.mxu0 0.0
    %347 = vmatpush1.msra.mxu0 %v183
    %348 = vmatprep.subr.mxu0 0.0
    %349 = vmatpush1.msra.mxu0 %v184
    %350 = vmatprep.subr.mxu0 0.0
    %351 = vmatpush1.msra.mxu0 %v185
    %352 = vmatprep.subr.mxu0 0.0
    %353 = vmatpush1.msra.mxu0 %v186
    %354 = vmatprep.mubr.f32.mxu0 %v147
    %355 = vmatmul.mubr.f32.gmra.mrb[0].mxu0 %v146
    %v356 = vpop.f32.mrb[0].mxu0
    %v357 = vadd.f32 %v288, %v356
    %v358 = vpop.f32.mrb[0].mxu0
    %359 = vdwg.mxu0
    %360 = vmatprep.subr.mxu0 0.0
    %361 = vmatpush1.msra.mxu0 %v187
    %362 = vmatprep.subr.mxu0 0.0
    %363 = vmatpush1.msra.mxu0 %v188
    %364 = vmatprep.subr.mxu0 0.0
    %365 = vmatpush1.msra.mxu0 %v189
    %366 = vmatprep.subr.mxu0 0.0
    %367 = vmatpush1.msra.mxu0 %v190
    %368 = vmatprep.subr.mxu0 0.0
    %369 = vmatpush1.msra.mxu0 %v191
    %370 = vmatprep.subr.mxu0 0.0
    %371 = vmatpush1.msra.mxu0 %v192
    %372 = vmatprep.subr.mxu0 0.0
    %373 = vmatpush1.msra.mxu0 %v193
    %374 = vmatprep.subr.mxu0 0.0
    %375 = vmatpush1.msra.mxu0 %v194
    %376 = vmatprep.subr.mxu0 0.0
    %377 = vmatpush1.msra.mxu0 %v195
    %378 = vmatprep.subr.mxu0 0.0
    %379 = vmatpush1.msra.mxu0 %v196
    %380 = vmatprep.subr.mxu0 0.0
    %381 = vmatpush1.msra.mxu0 %v197
    %382 = vmatprep.subr.mxu0 0.0
    %383 = vmatpush1.msra.mxu0 %v198
    %384 = vmatprep.subr.mxu0 0.0
    %385 = vmatpush1.msra.mxu0 %v199
    %386 = vmatprep.subr.mxu0 0.0
    %387 = vmatpush1.msra.mxu0 %v200
    %388 = vmatprep.subr.mxu0 0.0
    %389 = vmatpush1.msra.mxu0 %v201
    %390 = vmatprep.subr.mxu0 0.0
    %391 = vmatpush1.msra.mxu0 %v202
    %392 = vmatprep.subr.mxu0 0.0
    %393 = vmatpush1.msra.mxu0 %v203
    %394 = vmatprep.subr.mxu0 0.0
    %395 = vmatpush1.msra.mxu0 %v204
    %396 = vmatprep.subr.mxu0 0.0
    %397 = vmatpush1.msra.mxu0 %v205
    %398 = vmatprep.subr.mxu0 0.0
    %399 = vmatpush1.msra.mxu0 %v206
    %400 = vmatprep.subr.mxu0 0.0
    %401 = vmatpush1.msra.mxu0 %v207
    %402 = vmatprep.subr.mxu0 0.0
    %403 = vmatpush1.msra.mxu0 %v208
    %404 = vmatprep.subr.mxu0 0.0
    %405 = vmatpush1.msra.mxu0 %v209
    %406 = vmatprep.subr.mxu0 0.0
    %407 = vmatpush1.msra.mxu0 %v210
    %408 = vmatprep.subr.mxu0 0.0
    %409 = vmatpush1.msra.mxu0 %v211
    %410 = vmatprep.subr.mxu0 0.0
    %411 = vmatpush1.msra.mxu0 %v212
    %412 = vmatprep.subr.mxu0 0.0
    %413 = vmatpush1.msra.mxu0 %v213
    %414 = vmatprep.subr.mxu0 0.0
    %415 = vmatpush1.msra.mxu0 %v214
    %416 = vmatprep.subr.mxu0 0.0
    %417 = vmatpush1.msra.mxu0 %v215
    %418 = vmatprep.subr.mxu0 0.0
    %419 = vmatpush1.msra.mxu0 %v216
    %420 = vmatprep.subr.mxu0 0.0
    %421 = vmatpush1.msra.mxu0 %v217
    %422 = vmatprep.subr.mxu0 0.0
    %423 = vmatpush1.msra.mxu0 %v218
    %424 = vmatprep.mubr.f32.mxu0 %v149
    %425 = vmatmul.mubr.f32.gmra.mrb[0].mxu0 %v148
    %v426 = vpop.f32.mrb[0].mxu0
    %v427 = vadd.f32 %v357, %v426
    %v428 = vpop.f32.mrb[0].mxu0
    %429 = vdwg.mxu0
    %430 = vmatprep.subr.mxu0 0.0
    %431 = vmatpush1.msra.mxu0 %v219
    %432 = vmatprep.subr.mxu0 0.0
    %433 = vmatpush1.msra.mxu0 %v220
    %434 = vmatprep.subr.mxu0 0.0
    %435 = vmatpush1.msra.mxu0 %v221
    %436 = vmatprep.subr.mxu0 0.0
    %437 = vmatpush1.msra.mxu0 %v222
    %438 = vmatprep.subr.mxu0 0.0
    %439 = vmatpush1.msra.mxu0 %v223
    %440 = vmatprep.subr.mxu0 0.0
    %441 = vmatpush1.msra.mxu0 %v224
    %442 = vmatprep.subr.mxu0 0.0
    %443 = vmatpush1.msra.mxu0 %v225
    %444 = vmatprep.subr.mxu0 0.0
    %445 = vmatpush1.msra.mxu0 %v226
    %446 = vmatprep.subr.mxu0 0.0
    %447 = vmatpush1.msra.mxu0 %v227
    %448 = vmatprep.subr.mxu0 0.0
    %449 = vmatpush1.msra.mxu0 %v228
    %450 = vmatprep.subr.mxu0 0.0
    %451 = vmatpush1.msra.mxu0 %v229
    %452 = vmatprep.subr.mxu0 0.0
    %453 = vmatpush1.msra.mxu0 %v230
    %454 = vmatprep.subr.mxu0 0.0
    %455 = vmatpush1.msra.mxu0 %v231
    %456 = vmatprep.subr.mxu0 0.0
    %457 = vmatpush1.msra.mxu0 %v232
    %458 = vmatprep.subr.mxu0 0.0
    %459 = vmatpush1.msra.mxu0 %v233
    %460 = vmatprep.subr.mxu0 0.0
    %461 = vmatpush1.msra.mxu0 %v234
    %462 = vmatprep.subr.mxu0 0.0
    %463 = vmatpush1.msra.mxu0 %v235
    %464 = vmatprep.subr.mxu0 0.0
    %465 = vmatpush1.msra.mxu0 %v236
    %466 = vmatprep.subr.mxu0 0.0
    %467 = vmatpush1.msra.mxu0 %v237
    %468 = vmatprep.subr.mxu0 0.0
    %469 = vmatpush1.msra.mxu0 %v238
    %470 = vmatprep.subr.mxu0 0.0
    %471 = vmatpush1.msra.mxu0 %v239
    %472 = vmatprep.subr.mxu0 0.0
    %473 = vmatpush1.msra.mxu0 %v240
    %474 = vmatprep.subr.mxu0 0.0
    %475 = vmatpush1.msra.mxu0 %v241
    %476 = vmatprep.subr.mxu0 0.0
    %477 = vmatpush1.msra.mxu0 %v242
    %478 = vmatprep.subr.mxu0 0.0
    %479 = vmatpush1.msra.mxu0 %v243
    %480 = vmatprep.subr.mxu0 0.0
    %481 = vmatpush1.msra.mxu0 %v244
    %482 = vmatprep.subr.mxu0 0.0
    %483 = vmatpush1.msra.mxu0 %v245
    %484 = vmatprep.subr.mxu0 0.0
    %485 = vmatpush1.msra.mxu0 %v246
    %486 = vmatprep.subr.mxu0 0.0
    %487 = vmatpush1.msra.mxu0 %v247
    %488 = vmatprep.subr.mxu0 0.0
    %489 = vmatpush1.msra.mxu0 %v248
    %490 = vmatprep.subr.mxu0 0.0
    %491 = vmatpush1.msra.mxu0 %v249
    %492 = vmatprep.subr.mxu0 0.0
    %493 = vmatpush1.msra.mxu0 %v250
    %494 = vmatprep.mubr.f32.mxu0 %v151
    %495 = vmatmul.mubr.f32.gmra.mrb[0].mxu0 %v150
    %v496 = vpop.f32.mrb[0].mxu0
    %v497 = vadd.f32 %v427, %v496
    %v498 = vpop.f32.mrb[0].mxu0
    %499 = vdwg.mxu0
    %500 = vmatprep.subr.mxu0 0.0
    %501 = vmatpush1.msra.mxu0 %v251
    %502 = vmatprep.subr.mxu0 0.0
    %503 = vmatpush1.msra.mxu0 %v252
    %504 = vmatprep.subr.mxu0 0.0
    %505 = vmatpush1.msra.mxu0 %v253
    %506 = vmatprep.subr.mxu0 0.0
    %507 = vmatpush1.msra.mxu0 %v254
    %508 = vmatprep.subr.mxu0 0.0
    %509 = vmatpush1.msra.mxu0 %v255
    %510 = vmatprep.subr.mxu0 0.0
    %511 = vmatpush1.msra.mxu0 %v256
    %512 = vmatprep.subr.mxu0 0.0
    %513 = vmatpush1.msra.mxu0 %v257
    %514 = vmatprep.subr.mxu0 0.0
    %515 = vmatpush1.msra.mxu0 %v258
    %516 = vmatprep.subr.mxu0 0.0
    %517 = vmatpush1.msra.mxu0 %v259
    %518 = vmatprep.subr.mxu0 0.0
    %519 = vmatpush1.msra.mxu0 %v260
    %520 = vmatprep.subr.mxu0 0.0
    %521 = vmatpush1.msra.mxu0 %v261
    %522 = vmatprep.subr.mxu0 0.0
    %523 = vmatpush1.msra.mxu0 %v262
    %524 = vmatprep.subr.mxu0 0.0
    %525 = vmatpush1.msra.mxu0 %v263
    %526 = vmatprep.subr.mxu0 0.0
    %527 = vmatpush1.msra.mxu0 %v264
    %528 = vmatprep.subr.mxu0 0.0
    %529 = vmatpush1.msra.mxu0 %v265
    %530 = vmatprep.subr.mxu0 0.0
    %531 = vmatpush1.msra.mxu0 %v266
    %532 = vmatprep.subr.mxu0 0.0
    %533 = vmatpush1.msra.mxu0 %v267
    %534 = vmatprep.subr.mxu0 0.0
    %535 = vmatpush1.msra.mxu0 %v268
    %536 = vmatprep.subr.mxu0 0.0
    %537 = vmatpush1.msra.mxu0 %v269
    %538 = vmatprep.subr.mxu0 0.0
    %539 = vmatpush1.msra.mxu0 %v270
    %540 = vmatprep.subr.mxu0 0.0
    %541 = vmatpush1.msra.mxu0 %v271
    %542 = vmatprep.subr.mxu0 0.0
    %543 = vmatpush1.msra.mxu0 %v272
    %544 = vmatprep.subr.mxu0 0.0
    %545 = vmatpush1.msra.mxu0 %v273
    %546 = vmatprep.subr.mxu0 0.0
    %547 = vmatpush1.msra.mxu0 %v274
    %548 = vmatprep.subr.mxu0 0.0
    %549 = vmatpush1.msra.mxu0 %v275
    %550 = vmatprep.subr.mxu0 0.0
    %551 = vmatpush1.msra.mxu0 %v276
    %552 = vmatprep.subr.mxu0 0.0
    %553 = vmatpush1.msra.mxu0 %v277
    %554 = vmatprep.subr.mxu0 0.0
    %555 = vmatpush1.msra.mxu0 %v278
    %556 = vmatprep.subr.mxu0 0.0
    %557 = vmatpush1.msra.mxu0 %v279
    %558 = vmatprep.subr.mxu0 0.0
    %559 = vmatpush1.msra.mxu0 %v280
    %560 = vmatprep.subr.mxu0 0.0
    %561 = vmatpush1.msra.mxu0 %v281
    %562 = vmatprep.subr.mxu0 0.0
    %563 = vmatpush1.msra.mxu0 %v282
    %564 = vmatprep.mubr.f32.mxu0 %v153
    %565 = vmatmul.mubr.f32.gmra.mrb[0].mxu0 %v152
    %v566 = vpop.f32.mrb[0].mxu0
    %v567 = vadd.f32 %v497, %v566
    %v568 = vpop.f32.mrb[0].mxu0
    %569 = vdwg.mxu0
    %v570 = vmul.f32 %v567, 0.5
    %v571 = vmul.f32 %v570, 1.442695
    %v572 = vpow.pop %v571
    %574 = vrot.lane.b32.xlu0 %v572, 112
    %v575 = vpop.permute.xlu0 %574
    %v577 = vmul.f32 %v154, %v575
    %v578 = vadd.f32 %v567, %v577
    %v579 = vadd.f32 %v567, 1.837877
    %v580 = vmul.f32 %v579, -0.5
    %v581 = vsub.f32 %v578, %v567
    %v582 = vmul.f32 %v581, %v581
    %v583 = vmul.f32 %v582, 0.5
    %v584 = vsub.f32 0.0, %v567
    %v585 = vmul.f32 %v584, 1.442695
    %v586 = vpow.pop %v585
    %588 = vrot.lane.b32.xlu0 %v586, 112
    %v589 = vpop.permute.xlu0 %588
    %v591 = vmul.f32 %v583, %v589
    %593 = vrot.lane.b32.xlu0 %v591, 16
    %v594 = vpop.permute.xlu0 %593
    %v596 = vsub.f32 %v580, %v594
    %598 = vrot.lane.b32.xlu0 %v596, 112
    %v599 = vpop.permute.xlu0 %598
    %vm601 = vcmask 130048
    %v602 = vsel %vm601, %v599, 0.0
    %603 = vadd.xlane.f32.xlu0 %v602
    %v604 = vpop.xlane.xlu0 %603
    %v605 = vmul.f32 %v578, 0.5
    %v606 = vmul.f32 %v605, %v578
    %v607 = vsub.f32 -0.9189385, %v606
    %v608 = vsel %vm601, %v607, 0.0
    %609 = vadd.xlane.f32.xlu0 %v608
    %v610 = vpop.xlane.xlu0 %609
    %v612 = vcombine.high %v578, %v578
    %v614 = vunpack.c.l.s4 1966171168
    %v615 = vunpack.c.0.s8 %v614
    %v616 = vlaneseq
    %v617 = vshrl.u32 %v616, 7
    %v618 = vsub.s32 %v615, %v617
    %v619 = vrot.slane %v578, %v618
    %v621 = vunpack.c.l.s4 1966171168
    %v622 = vunpack.c.0.s8 %v621
    %v623 = vlaneseq
    %v624 = vshrl.u32 %v623, 7
    %v625 = vsub.s32 %v622, %v624
    %v626 = vrot.slane %v612, %v625
    %v627 = vcombine.high %v619, %v619
    %v628 = vcombine.high %v626, %v626
    %v630 = vunpack.c.l.s4 1966171168
    %v631 = vunpack.c.0.s8 %v630
    %v632 = vlaneseq
    %v633 = vshrl.u32 %v632, 7
    %v634 = vsub.s32 %v631, %v633
    %v635 = vrot.slane %v619, %v634
    %v637 = vunpack.c.l.s4 1966171168
    %v638 = vunpack.c.0.s8 %v637
    %v639 = vlaneseq
    %v640 = vshrl.u32 %v639, 7
    %v641 = vsub.s32 %v638, %v640
    %v642 = vrot.slane %v626, %v641
    %v644 = vunpack.c.l.s4 1966171168
    %v645 = vunpack.c.0.s8 %v644
    %v646 = vlaneseq
    %v647 = vshrl.u32 %v646, 7
    %v648 = vsub.s32 %v645, %v647
    %v649 = vrot.slane %v627, %v648
    %v651 = vunpack.c.l.s4 1966171168
    %v652 = vunpack.c.0.s8 %v651
    %v653 = vlaneseq
    %v654 = vshrl.u32 %v653, 7
    %v655 = vsub.s32 %v652, %v654
    %v656 = vrot.slane %v628, %v655
    %v657 = vcombine.high %v635, %v635
    %v658 = vcombine.high %v642, %v642
    %v659 = vcombine.high %v649, %v649
    %v660 = vcombine.high %v656, %v656
    %v661 = vlaneseq
    %v662 = vshrl.u32 %v661, 7
    %v663 = vsub.s32 0, %v662
    %v664 = vrot.slane %v635, %v663
    %v665 = vlaneseq
    %v666 = vshrl.u32 %v665, 7
    %v667 = vsub.s32 0, %v666
    %v668 = vrot.slane %v649, %v667
    %v669 = vlaneseq
    %v670 = vshrl.u32 %v669, 7
    %v671 = vsub.s32 0, %v670
    %v672 = vrot.slane %v657, %v671
    %v673 = vlaneseq
    %v674 = vshrl.u32 %v673, 7
    %v675 = vsub.s32 0, %v674
    %v676 = vrot.slane %v659, %v675
    %v677 = vlaneseq
    %v678 = vshrl.u32 %v677, 7
    %v679 = vsub.s32 0, %v678
    %v680 = vrot.slane %v642, %v679
    %v681 = vlaneseq
    %v682 = vshrl.u32 %v681, 7
    %v683 = vsub.s32 0, %v682
    %v684 = vrot.slane %v656, %v683
    %v685 = vlaneseq
    %v686 = vshrl.u32 %v685, 7
    %v687 = vsub.s32 0, %v686
    %v688 = vrot.slane %v658, %v687
    %v689 = vlaneseq
    %v690 = vshrl.u32 %v689, 7
    %v691 = vsub.s32 0, %v690
    %v692 = vrot.slane %v660, %v691
    %v701 = vsub.f32 %v664, %v567
    %v702 = vsub.f32 %v668, %v567
    %v703 = vsub.f32 %v672, %v567
    %v704 = vsub.f32 %v676, %v567
    %v705 = vsub.f32 %v680, %v567
    %v706 = vsub.f32 %v684, %v567
    %v707 = vsub.f32 %v688, %v567
    %v708 = vsub.f32 %v692, %v567
    %v709 = vmul.f32 %v701, %v701
    %v710 = vmul.f32 %v702, %v702
    %v711 = vmul.f32 %v703, %v703
    %v712 = vmul.f32 %v704, %v704
    %v713 = vmul.f32 %v705, %v705
    %v714 = vmul.f32 %v706, %v706
    %v715 = vmul.f32 %v707, %v707
    %v716 = vmul.f32 %v708, %v708
    %v717 = vmul.f32 %v709, 0.5
    %v718 = vmul.f32 %v710, 0.5
    %v719 = vmul.f32 %v711, 0.5
    %v720 = vmul.f32 %v712, 0.5
    %v721 = vmul.f32 %v713, 0.5
    %v722 = vmul.f32 %v714, 0.5
    %v723 = vmul.f32 %v715, 0.5
    %v724 = vmul.f32 %v716, 0.5
    %v725 = vmul.f32 %v717, %v589
    %v726 = vmul.f32 %v718, %v589
    %v727 = vmul.f32 %v719, %v589
    %v728 = vmul.f32 %v720, %v589
    %v729 = vmul.f32 %v721, %v589
    %v730 = vmul.f32 %v722, %v589
    %v731 = vmul.f32 %v723, %v589
    %v732 = vmul.f32 %v724, %v589
    %741 = vrot.lane.b32.xlu0 %v725, 16
    %v742 = vpop.permute.xlu0 %741
    %743 = vrot.lane.b32.xlu0 %v726, 16
    %v744 = vpop.permute.xlu0 %743
    %745 = vrot.lane.b32.xlu0 %v727, 16
    %v746 = vpop.permute.xlu0 %745
    %747 = vrot.lane.b32.xlu0 %v728, 16
    %v748 = vpop.permute.xlu0 %747
    %749 = vrot.lane.b32.xlu0 %v729, 16
    %v750 = vpop.permute.xlu0 %749
    %751 = vrot.lane.b32.xlu0 %v730, 16
    %v752 = vpop.permute.xlu0 %751
    %753 = vrot.lane.b32.xlu0 %v731, 16
    %v754 = vpop.permute.xlu0 %753
    %755 = vrot.lane.b32.xlu0 %v732, 16
    %v756 = vpop.permute.xlu0 %755
    %v765 = vsub.f32 %v580, %v742
    %v766 = vsub.f32 %v580, %v744
    %v767 = vsub.f32 %v580, %v746
    %v768 = vsub.f32 %v580, %v748
    %v769 = vsub.f32 %v580, %v750
    %v770 = vsub.f32 %v580, %v752
    %v771 = vsub.f32 %v580, %v754
    %v772 = vsub.f32 %v580, %v756
    %v773 = vld [vmem:[#allocation10] sm:$0xff]
    %v774 = vlaneseq
    %v775 = vshrl.u32 %v774, 7
    %v776 = vsub.s32 0, %v775
    %v777 = vrot.slane %v773, %v776
    %779 = vbcast.lane.b32.xlu0 %v777, 256
    %v780 = vpop.permute.xlu0 %779
    %v781 = vlaneseq
    %v782 = vshrl.u32 %v781, 7
    %v783 = vsub.s32 1, %v782
    %v784 = vrot.slane %v773, %v783
    %786 = vbcast.lane.b32.xlu0 %v784, 256
    %v787 = vpop.permute.xlu0 %786
    %v788 = vlaneseq
    %v789 = vshrl.u32 %v788, 7
    %v790 = vsub.s32 2, %v789
    %v791 = vrot.slane %v773, %v790
    %793 = vbcast.lane.b32.xlu0 %v791, 256
    %v794 = vpop.permute.xlu0 %793
    %v795 = vlaneseq
    %v796 = vshrl.u32 %v795, 7
    %v797 = vsub.s32 3, %v796
    %v798 = vrot.slane %v773, %v797
    %800 = vbcast.lane.b32.xlu0 %v798, 256
    %v801 = vpop.permute.xlu0 %800
    %v802 = vlaneseq
    %v803 = vshrl.u32 %v802, 7
    %v804 = vsub.s32 4, %v803
    %v805 = vrot.slane %v773, %v804
    %807 = vbcast.lane.b32.xlu0 %v805, 256
    %v808 = vpop.permute.xlu0 %807
    %v809 = vlaneseq
    %v810 = vshrl.u32 %v809, 7
    %v811 = vsub.s32 5, %v810
    %v812 = vrot.slane %v773, %v811
    %814 = vbcast.lane.b32.xlu0 %v812, 256
    %v815 = vpop.permute.xlu0 %814
    %v816 = vlaneseq
    %v817 = vshrl.u32 %v816, 7
    %v818 = vsub.s32 6, %v817
    %v819 = vrot.slane %v773, %v818
    %821 = vbcast.lane.b32.xlu0 %v819, 256
    %v822 = vpop.permute.xlu0 %821
    %v823 = vlaneseq
    %v824 = vshrl.u32 %v823, 7
    %v825 = vsub.s32 7, %v824
    %v826 = vrot.slane %v773, %v825
    %828 = vbcast.lane.b32.xlu0 %v826, 256
    %v829 = vpop.permute.xlu0 %828
    %v830 = vadd.f32 %v765, %v780
    %v831 = vadd.f32 %v766, %v787
    %v832 = vadd.f32 %v767, %v794
    %v833 = vadd.f32 %v768, %v801
    %v834 = vadd.f32 %v769, %v808
    %v835 = vadd.f32 %v770, %v815
    %v836 = vadd.f32 %v771, %v822
    %v837 = vadd.f32 %v772, %v829
    %vm838 = vcmask 261248
    %v839 = vsel %vm838, %v830, -inf
    %v840 = vrot.slane %v839, 4
    %v841 = vmax.f32 %v839, %v840
    %v842 = vrot.slane %v841, 2
    %v843 = vmax.f32 %v841, %v842
    %v844 = vrot.slane %v843, 1
    %v845 = vmax.f32 %v843, %v844
    %v846 = vsel %vm838, %v831, -inf
    %v847 = vrot.slane %v846, 4
    %v848 = vmax.f32 %v846, %v847
    %v849 = vrot.slane %v848, 2
    %v850 = vmax.f32 %v848, %v849
    %v851 = vrot.slane %v850, 1
    %v852 = vmax.f32 %v850, %v851
    %v853 = vsel %vm838, %v832, -inf
    %v854 = vrot.slane %v853, 4
    %v855 = vmax.f32 %v853, %v854
    %v856 = vrot.slane %v855, 2
    %v857 = vmax.f32 %v855, %v856
    %v858 = vrot.slane %v857, 1
    %v859 = vmax.f32 %v857, %v858
    %v860 = vsel %vm838, %v833, -inf
    %v861 = vrot.slane %v860, 4
    %v862 = vmax.f32 %v860, %v861
    %v863 = vrot.slane %v862, 2
    %v864 = vmax.f32 %v862, %v863
    %v865 = vrot.slane %v864, 1
    %v866 = vmax.f32 %v864, %v865
    %v867 = vsel %vm838, %v834, -inf
    %v868 = vrot.slane %v867, 4
    %v869 = vmax.f32 %v867, %v868
    %v870 = vrot.slane %v869, 2
    %v871 = vmax.f32 %v869, %v870
    %v872 = vrot.slane %v871, 1
    %v873 = vmax.f32 %v871, %v872
    %v874 = vsel %vm838, %v835, -inf
    %v875 = vrot.slane %v874, 4
    %v876 = vmax.f32 %v874, %v875
    %v877 = vrot.slane %v876, 2
    %v878 = vmax.f32 %v876, %v877
    %v879 = vrot.slane %v878, 1
    %v880 = vmax.f32 %v878, %v879
    %v881 = vsel %vm838, %v836, -inf
    %v882 = vrot.slane %v881, 4
    %v883 = vmax.f32 %v881, %v882
    %v884 = vrot.slane %v883, 2
    %v885 = vmax.f32 %v883, %v884
    %v886 = vrot.slane %v885, 1
    %v887 = vmax.f32 %v885, %v886
    %v888 = vsel %vm838, %v837, -inf
    %v889 = vrot.slane %v888, 4
    %v890 = vmax.f32 %v888, %v889
    %v891 = vrot.slane %v890, 2
    %v892 = vmax.f32 %v890, %v891
    %v893 = vrot.slane %v892, 1
    %v894 = vmax.f32 %v892, %v893
    %v895 = vsub.f32 %v830, %v845
    %v896 = vsub.f32 %v831, %v852
    %v897 = vsub.f32 %v832, %v859
    %v898 = vsub.f32 %v833, %v866
    %v899 = vsub.f32 %v834, %v873
    %v900 = vsub.f32 %v835, %v880
    %v901 = vsub.f32 %v836, %v887
    %v902 = vsub.f32 %v837, %v894
    %v903 = vmul.f32 %v895, 1.442695
    %v904 = vpow.pop %v903
    %v905 = vmul.f32 %v896, 1.442695
    %v906 = vpow.pop %v905
    %v907 = vmul.f32 %v897, 1.442695
    %v908 = vpow.pop %v907
    %v909 = vmul.f32 %v898, 1.442695
    %v910 = vpow.pop %v909
    %v911 = vmul.f32 %v899, 1.442695
    %v912 = vpow.pop %v911
    %v913 = vmul.f32 %v900, 1.442695
    %v914 = vpow.pop %v913
    %v915 = vmul.f32 %v901, 1.442695
    %v916 = vpow.pop %v915
    %v917 = vmul.f32 %v902, 1.442695
    %v918 = vpow.pop %v917
    %v919 = vsel %vm838, %v904, 0.0
    %v920 = vrot.slane %v919, 4
    %v921 = vadd.f32 %v919, %v920
    %v922 = vrot.slane %v921, 2
    %v923 = vadd.f32 %v921, %v922
    %v924 = vrot.slane %v923, 1
    %v925 = vadd.f32 %v923, %v924
    %v926 = vsel %vm838, %v906, 0.0
    %v927 = vrot.slane %v926, 4
    %v928 = vadd.f32 %v926, %v927
    %v929 = vrot.slane %v928, 2
    %v930 = vadd.f32 %v928, %v929
    %v931 = vrot.slane %v930, 1
    %v932 = vadd.f32 %v930, %v931
    %v933 = vsel %vm838, %v908, 0.0
    %v934 = vrot.slane %v933, 4
    %v935 = vadd.f32 %v933, %v934
    %v936 = vrot.slane %v935, 2
    %v937 = vadd.f32 %v935, %v936
    %v938 = vrot.slane %v937, 1
    %v939 = vadd.f32 %v937, %v938
    %v940 = vsel %vm838, %v910, 0.0
    %v941 = vrot.slane %v940, 4
    %v942 = vadd.f32 %v940, %v941
    %v943 = vrot.slane %v942, 2
    %v944 = vadd.f32 %v942, %v943
    %v945 = vrot.slane %v944, 1
    %v946 = vadd.f32 %v944, %v945
    %v947 = vsel %vm838, %v912, 0.0
    %v948 = vrot.slane %v947, 4
    %v949 = vadd.f32 %v947, %v948
    %v950 = vrot.slane %v949, 2
    %v951 = vadd.f32 %v949, %v950
    %v952 = vrot.slane %v951, 1
    %v953 = vadd.f32 %v951, %v952
    %v954 = vsel %vm838, %v914, 0.0
    %v955 = vrot.slane %v954, 4
    %v956 = vadd.f32 %v954, %v955
    %v957 = vrot.slane %v956, 2
    %v958 = vadd.f32 %v956, %v957
    %v959 = vrot.slane %v958, 1
    %v960 = vadd.f32 %v958, %v959
    %v961 = vsel %vm838, %v916, 0.0
    %v962 = vrot.slane %v961, 4
    %v963 = vadd.f32 %v961, %v962
    %v964 = vrot.slane %v963, 2
    %v965 = vadd.f32 %v963, %v964
    %v966 = vrot.slane %v965, 1
    %v967 = vadd.f32 %v965, %v966
    %v968 = vsel %vm838, %v918, 0.0
    %v969 = vrot.slane %v968, 4
    %v970 = vadd.f32 %v968, %v969
    %v971 = vrot.slane %v970, 2
    %v972 = vadd.f32 %v970, %v971
    %v973 = vrot.slane %v972, 1
    %v974 = vadd.f32 %v972, %v973
    %v975 = vlog2.pop %v925
    %v976 = vmul.f32 %v975, 0.6931472
    %v977 = vlog2.pop %v932
    %v978 = vmul.f32 %v977, 0.6931472
    %v979 = vlog2.pop %v939
    %v980 = vmul.f32 %v979, 0.6931472
    %v981 = vlog2.pop %v946
    %v982 = vmul.f32 %v981, 0.6931472
    %v983 = vlog2.pop %v953
    %v984 = vmul.f32 %v983, 0.6931472
    %v985 = vlog2.pop %v960
    %v986 = vmul.f32 %v985, 0.6931472
    %v987 = vlog2.pop %v967
    %v988 = vmul.f32 %v987, 0.6931472
    %v989 = vlog2.pop %v974
    %v990 = vmul.f32 %v989, 0.6931472
    %v991 = vadd.f32 %v845, %v976
    %v992 = vadd.f32 %v852, %v978
    %v993 = vadd.f32 %v859, %v980
    %v994 = vadd.f32 %v866, %v982
    %v995 = vadd.f32 %v873, %v984
    %v996 = vadd.f32 %v880, %v986
    %v997 = vadd.f32 %v887, %v988
    %v998 = vadd.f32 %v894, %v990
    %vm1007 = vcmask 1041409
    %v1008 = vsel %vm1007, %v992, %v991
    %vm1009 = vcmask 1042434
    %v1010 = vsel %vm1009, %v993, %v1008
    %vm1011 = vcmask 1043459
    %v1012 = vsel %vm1011, %v994, %v1010
    %vm1013 = vcmask 1044484
    %v1014 = vsel %vm1013, %v995, %v1012
    %vm1015 = vcmask 1045509
    %v1016 = vsel %vm1015, %v996, %v1014
    %vm1017 = vcmask 1046534
    %v1018 = vsel %vm1017, %v997, %v1016
    %vm1019 = vcmask 1047559
    %v1020 = vsel %vm1019, %v998, %v1018
    %1021 = vrot.lane.b32.xlu0 %v1020, 112
    %v1022 = vpop.permute.xlu0 %1021
    %v1024 = vsel %vm601, %v1022, 0.0
    %1025 = vadd.xlane.f32.xlu0 %v1024
    %v1026 = vpop.xlane.xlu0 %1025
    %1035 = vrot.lane.b32.xlu0 %v830, 112
    %v1036 = vpop.permute.xlu0 %1035
    %1037 = vrot.lane.b32.xlu0 %v831, 112
    %v1038 = vpop.permute.xlu0 %1037
    %1039 = vrot.lane.b32.xlu0 %v832, 112
    %v1040 = vpop.permute.xlu0 %1039
    %1041 = vrot.lane.b32.xlu0 %v833, 112
    %v1042 = vpop.permute.xlu0 %1041
    %1043 = vrot.lane.b32.xlu0 %v834, 112
    %v1044 = vpop.permute.xlu0 %1043
    %1045 = vrot.lane.b32.xlu0 %v835, 112
    %v1046 = vpop.permute.xlu0 %1045
    %1047 = vrot.lane.b32.xlu0 %v836, 112
    %v1048 = vpop.permute.xlu0 %1047
    %1049 = vrot.lane.b32.xlu0 %v837, 112
    %v1050 = vpop.permute.xlu0 %1049
    %v1059 = vsel %vm601, %v1036, 0.0
    %1060 = vadd.xlane.f32.xlu0 %v1059
    %v1061 = vpop.xlane.xlu0 %1060
    %v1062 = vsel %vm601, %v1038, 0.0
    %1063 = vadd.xlane.f32.xlu0 %v1062
    %v1064 = vpop.xlane.xlu0 %1063
    %v1065 = vsel %vm601, %v1040, 0.0
    %1066 = vadd.xlane.f32.xlu0 %v1065
    %v1067 = vpop.xlane.xlu0 %1066
    %v1068 = vsel %vm601, %v1042, 0.0
    %1069 = vadd.xlane.f32.xlu0 %v1068
    %v1070 = vpop.xlane.xlu0 %1069
    %v1071 = vsel %vm601, %v1044, 0.0
    %1072 = vadd.xlane.f32.xlu0 %v1071
    %v1073 = vpop.xlane.xlu0 %1072
    %v1074 = vsel %vm601, %v1046, 0.0
    %1075 = vadd.xlane.f32.xlu0 %v1074
    %v1076 = vpop.xlane.xlu0 %1075
    %v1077 = vsel %vm601, %v1048, 0.0
    %1078 = vadd.xlane.f32.xlu0 %v1077
    %v1079 = vpop.xlane.xlu0 %1078
    %v1080 = vsel %vm601, %v1050, 0.0
    %1081 = vadd.xlane.f32.xlu0 %v1080
    %v1082 = vpop.xlane.xlu0 %1081
    %v1091 = vlaneseq
    %v1092 = vand.u32 %v1091, 127
    %v1093 = vlaneseq
    %v1094 = vshrl.u32 %v1093, 7
    %v1095 = vsub.s32 %v1092, %v1094
    %v1096 = vrot.slane %v1061, %v1095
    %v1097 = vlaneseq
    %v1098 = vshrl.u32 %v1097, 7
    %v1099 = vsub.s32 %v1092, %v1098
    %v1100 = vrot.slane %v1064, %v1099
    %v1101 = vlaneseq
    %v1102 = vshrl.u32 %v1101, 7
    %v1103 = vsub.s32 %v1092, %v1102
    %v1104 = vrot.slane %v1067, %v1103
    %v1105 = vlaneseq
    %v1106 = vshrl.u32 %v1105, 7
    %v1107 = vsub.s32 %v1092, %v1106
    %v1108 = vrot.slane %v1070, %v1107
    %v1109 = vlaneseq
    %v1110 = vshrl.u32 %v1109, 7
    %v1111 = vsub.s32 %v1092, %v1110
    %v1112 = vrot.slane %v1073, %v1111
    %v1113 = vlaneseq
    %v1114 = vshrl.u32 %v1113, 7
    %v1115 = vsub.s32 %v1092, %v1114
    %v1116 = vrot.slane %v1076, %v1115
    %v1117 = vlaneseq
    %v1118 = vshrl.u32 %v1117, 7
    %v1119 = vsub.s32 %v1092, %v1118
    %v1120 = vrot.slane %v1079, %v1119
    %v1121 = vlaneseq
    %v1122 = vshrl.u32 %v1121, 7
    %v1123 = vsub.s32 %v1092, %v1122
    %v1124 = vrot.slane %v1082, %v1123
    %v1125 = vsel %vm1007, %v1100, %v1096
    %v1126 = vsel %vm1009, %v1104, %v1125
    %v1127 = vsel %vm1011, %v1108, %v1126
    %v1128 = vsel %vm1013, %v1112, %v1127
    %v1129 = vsel %vm1015, %v1116, %v1128
    %v1130 = vsel %vm1017, %v1120, %v1129
    %v1131 = vsel %vm1019, %v1124, %v1130
    %vm1133 = vcmask 64512
    %v1134 = vsel %vm1133, %v1131, -inf
    %1135 = vmax.xlane.f32.xlu0 %v1134
    %v1136 = vpop.xlane.xlu0 %1135
    %v1138 = vlaneseq
    %v1139 = vshrl.u32 %v1138, 7
    %v1140 = vsub.s32 0, %v1139
    %v1141 = vrot.slane %v1136, %v1140
    %v1142 = vlaneseq
    %v1143 = vshrl.u32 %v1142, 7
    %v1144 = vsub.s32 1, %v1143
    %v1145 = vrot.slane %v1136, %v1144
    %v1146 = vlaneseq
    %v1147 = vshrl.u32 %v1146, 7
    %v1148 = vsub.s32 2, %v1147
    %v1149 = vrot.slane %v1136, %v1148
    %v1150 = vlaneseq
    %v1151 = vshrl.u32 %v1150, 7
    %v1152 = vsub.s32 3, %v1151
    %v1153 = vrot.slane %v1136, %v1152
    %v1154 = vlaneseq
    %v1155 = vshrl.u32 %v1154, 7
    %v1156 = vsub.s32 4, %v1155
    %v1157 = vrot.slane %v1136, %v1156
    %v1158 = vlaneseq
    %v1159 = vshrl.u32 %v1158, 7
    %v1160 = vsub.s32 5, %v1159
    %v1161 = vrot.slane %v1136, %v1160
    %v1162 = vlaneseq
    %v1163 = vshrl.u32 %v1162, 7
    %v1164 = vsub.s32 6, %v1163
    %v1165 = vrot.slane %v1136, %v1164
    %v1166 = vlaneseq
    %v1167 = vshrl.u32 %v1166, 7
    %v1168 = vsub.s32 7, %v1167
    %v1169 = vrot.slane %v1136, %v1168
    %v1178 = vsub.f32 %v1061, %v1141
    %v1179 = vsub.f32 %v1064, %v1145
    %v1180 = vsub.f32 %v1067, %v1149
    %v1181 = vsub.f32 %v1070, %v1153
    %v1182 = vsub.f32 %v1073, %v1157
    %v1183 = vsub.f32 %v1076, %v1161
    %v1184 = vsub.f32 %v1079, %v1165
    %v1185 = vsub.f32 %v1082, %v1169
    %v1186 = vmul.f32 %v1178, 1.442695
    %v1187 = vpow.pop %v1186
    %v1188 = vmul.f32 %v1179, 1.442695
    %v1189 = vpow.pop %v1188
    %v1190 = vmul.f32 %v1180, 1.442695
    %v1191 = vpow.pop %v1190
    %v1192 = vmul.f32 %v1181, 1.442695
    %v1193 = vpow.pop %v1192
    %v1194 = vmul.f32 %v1182, 1.442695
    %v1195 = vpow.pop %v1194
    %v1196 = vmul.f32 %v1183, 1.442695
    %v1197 = vpow.pop %v1196
    %v1198 = vmul.f32 %v1184, 1.442695
    %v1199 = vpow.pop %v1198
    %v1200 = vmul.f32 %v1185, 1.442695
    %v1201 = vpow.pop %v1200
    %1210 = vset.pattern.permute.xlu0 0
    %1211 = vperm.xlu0 %1210, %v1187
    %v1212 = vpop.permute.xlu0 %1211
    %1213 = vset.pattern.permute.xlu0 0
    %1214 = vperm.xlu0 %1213, %v1189
    %v1215 = vpop.permute.xlu0 %1214
    %1216 = vset.pattern.permute.xlu0 0
    %1217 = vperm.xlu0 %1216, %v1191
    %v1218 = vpop.permute.xlu0 %1217
    %1219 = vset.pattern.permute.xlu0 0
    %1220 = vperm.xlu0 %1219, %v1193
    %v1221 = vpop.permute.xlu0 %1220
    %1222 = vset.pattern.permute.xlu0 0
    %1223 = vperm.xlu0 %1222, %v1195
    %v1224 = vpop.permute.xlu0 %1223
    %1225 = vset.pattern.permute.xlu0 0
    %1226 = vperm.xlu0 %1225, %v1197
    %v1227 = vpop.permute.xlu0 %1226
    %1228 = vset.pattern.permute.xlu0 0
    %1229 = vperm.xlu0 %1228, %v1199
    %v1230 = vpop.permute.xlu0 %1229
    %1231 = vset.pattern.permute.xlu0 0
    %1232 = vperm.xlu0 %1231, %v1201
    %v1233 = vpop.permute.xlu0 %1232
    %v1234 = vlaneseq
    %v1235 = vshrl.u32 %v1234, 7
    %v1236 = vsub.s32 %v1092, %v1235
    %v1237 = vrot.slane %v1212, %v1236
    %v1238 = vlaneseq
    %v1239 = vshrl.u32 %v1238, 7
    %v1240 = vsub.s32 %v1092, %v1239
    %v1241 = vrot.slane %v1215, %v1240
    %v1242 = vlaneseq
    %v1243 = vshrl.u32 %v1242, 7
    %v1244 = vsub.s32 %v1092, %v1243
    %v1245 = vrot.slane %v1218, %v1244
    %v1246 = vlaneseq
    %v1247 = vshrl.u32 %v1246, 7
    %v1248 = vsub.s32 %v1092, %v1247
    %v1249 = vrot.slane %v1221, %v1248
    %v1250 = vlaneseq
    %v1251 = vshrl.u32 %v1250, 7
    %v1252 = vsub.s32 %v1092, %v1251
    %v1253 = vrot.slane %v1224, %v1252
    %v1254 = vlaneseq
    %v1255 = vshrl.u32 %v1254, 7
    %v1256 = vsub.s32 %v1092, %v1255
    %v1257 = vrot.slane %v1227, %v1256
    %v1258 = vlaneseq
    %v1259 = vshrl.u32 %v1258, 7
    %v1260 = vsub.s32 %v1092, %v1259
    %v1261 = vrot.slane %v1230, %v1260
    %v1262 = vlaneseq
    %v1263 = vshrl.u32 %v1262, 7
    %v1264 = vsub.s32 %v1092, %v1263
    %v1265 = vrot.slane %v1233, %v1264
    %v1266 = vsel %vm1007, %v1241, %v1237
    %v1267 = vsel %vm1009, %v1245, %v1266
    %v1268 = vsel %vm1011, %v1249, %v1267
    %v1269 = vsel %vm1013, %v1253, %v1268
    %v1270 = vsel %vm1015, %v1257, %v1269
    %v1271 = vsel %vm1017, %v1261, %v1270
    %v1272 = vsel %vm1019, %v1265, %v1271
    %v1274 = vsel %vm1133, %v1272, 0.0
    %1275 = vadd.xlane.f32.xlu0 %v1274
    %v1276 = vpop.xlane.xlu0 %1275
    %v1277 = vlog2.pop %v1276
    %v1278 = vmul.f32 %v1277, 0.6931472
    %v1279 = vadd.f32 %v1136, %v1278
    %v1280 = vadd.f32 %v567, 1.0
    %v1281 = vmul.f32 %v567, %v567
    %1283 = vrot.lane.b32.xlu0 %v1281, 16
    %v1284 = vpop.permute.xlu0 %1283
    %v1286 = vsub.f32 %v1280, %v1284
    %v1287 = vmul.f32 %v567, 1.442695
    %v1288 = vpow.pop %v1287
    %v1289 = vsub.f32 %v1286, %v1288
    %1291 = vrot.lane.b32.xlu0 %v1289, 112
    %v1292 = vpop.permute.xlu0 %1291
    %v1294 = vsel %vm601, %v1292, 0.0
    %1295 = vadd.xlane.f32.xlu0 %v1294
    %v1296 = vpop.xlane.xlu0 %1295
    %v1297 = vmul.f32 %v1296, -0.5
    %v1298 = vld [vmem:[#allocation11] sm:$0xff]
    %v1299 = vld [vmem:[#allocation11 + $0x8] sm:$0xff]
    %v1300 = vld [vmem:[#allocation13] sm:$0x1]
    %v1302 = vlaneseq
    %v1303 = vshrl.u32 %v1302, 7
    %v1304 = vsub.s32 0, %v1303
    %v1305 = vrot.slane %v1300, %v1304
    %v1307 = vsel %vm601, %v578, 0
    %1309 = vmatprep.subr.mxu0 0.0
    %1310 = vmatpush1.msra.mxu0 %v1298
    %1311 = vmatprep.subr.mxu0 0.0
    %1312 = vmatpush1.msra.mxu0 %v1299
    %1313 = vmatprep.subr.mxu0 0.0
    %1314 = vmatpush1.msra.mxu0 0.0
    %1315 = vmatprep.subr.mxu0 0.0
    %1316 = vmatpush1.msra.mxu0 0.0
    %1317 = vmatprep.subr.mxu0 0.0
    %1318 = vmatpush1.msra.mxu0 0.0
    %1319 = vmatprep.subr.mxu0 0.0
    %1320 = vmatpush1.msra.mxu0 0.0
    %1321 = vmatprep.subr.mxu0 0.0
    %1322 = vmatpush1.msra.mxu0 0.0
    %1323 = vmatprep.subr.mxu0 0.0
    %1324 = vmatpush1.msra.mxu0 0.0
    %1325 = vmatprep.subr.mxu0 0.0
    %1326 = vmatpush1.msra.mxu0 0.0
    %1327 = vmatprep.subr.mxu0 0.0
    %1328 = vmatpush1.msra.mxu0 0.0
    %1329 = vmatprep.subr.mxu0 0.0
    %1330 = vmatpush1.msra.mxu0 0.0
    %1331 = vmatprep.subr.mxu0 0.0
    %1332 = vmatpush1.msra.mxu0 0.0
    %1333 = vmatprep.subr.mxu0 0.0
    %1334 = vmatpush1.msra.mxu0 0.0
    %1335 = vmatprep.subr.mxu0 0.0
    %1336 = vmatpush1.msra.mxu0 0.0
    %1337 = vmatprep.subr.mxu0 0.0
    %1338 = vmatpush1.msra.mxu0 0.0
    %1339 = vmatprep.subr.mxu0 0.0
    %1340 = vmatpush1.msra.mxu0 0.0
    %1341 = vmatprep.subr.mxu0 0.0
    %1342 = vmatpush1.msra.mxu0 0.0
    %1343 = vmatprep.subr.mxu0 0.0
    %1344 = vmatpush1.msra.mxu0 0.0
    %1345 = vmatprep.subr.mxu0 0.0
    %1346 = vmatpush1.msra.mxu0 0.0
    %1347 = vmatprep.subr.mxu0 0.0
    %1348 = vmatpush1.msra.mxu0 0.0
    %1349 = vmatprep.subr.mxu0 0.0
    %1350 = vmatpush1.msra.mxu0 0.0
    %1351 = vmatprep.subr.mxu0 0.0
    %1352 = vmatpush1.msra.mxu0 0.0
    %1353 = vmatprep.subr.mxu0 0.0
    %1354 = vmatpush1.msra.mxu0 0.0
    %1355 = vmatprep.subr.mxu0 0.0
    %1356 = vmatpush1.msra.mxu0 0.0
    %1357 = vmatprep.subr.mxu0 0.0
    %1358 = vmatpush1.msra.mxu0 0.0
    %1359 = vmatprep.subr.mxu0 0.0
    %1360 = vmatpush1.msra.mxu0 0.0
    %1361 = vmatprep.subr.mxu0 0.0
    %1362 = vmatpush1.msra.mxu0 0.0
    %1363 = vmatprep.subr.mxu0 0.0
    %1364 = vmatpush1.msra.mxu0 0.0
    %1365 = vmatprep.subr.mxu0 0.0
    %1366 = vmatpush1.msra.mxu0 0.0
    %1367 = vmatprep.subr.mxu0 0.0
    %1368 = vmatpush1.msra.mxu0 0.0
    %1369 = vmatprep.subr.mxu0 0.0
    %1370 = vmatpush1.msra.mxu0 0.0
    %1371 = vmatprep.subr.mxu0 0.0
    %1372 = vmatpush1.msra.mxu0 0.0
    %1373 = vmatprep.mubr.f32.mxu0 0.0
    %1374 = vmatmul.mubr.f32.gmra.mrb[0].mxu0 %v1307
    %v1375 = vpop.f32.mrb[0].mxu0
    %v1376 = vadd.f32 %v1305, %v1375
    %v1377 = vpop.f32.mrb[0].mxu0
    %1378 = vdwg.mxu0
    %v1379 = vmul.f32 %v1376, 0.5
    %v1380 = vmul.f32 %v1379, 1.442695
    %v1381 = vpow.pop %v1380
    %1383 = vrot.lane.b32.xlu0 %v1381, 112
    %v1384 = vpop.permute.xlu0 %1383
    %v1386 = vmul.f32 %v154, %v1384
    %v1387 = vadd.f32 %v1376, %v1386
    %v1388 = vadd.f32 %v1376, 1.0
    %v1389 = vmul.f32 %v1376, %v1376
    %1391 = vrot.lane.b32.xlu0 %v1389, 16
    %v1392 = vpop.permute.xlu0 %1391
    %v1394 = vsub.f32 %v1388, %v1392
    %v1395 = vmul.f32 %v1376, 1.442695
    %v1396 = vpow.pop %v1395
    %v1397 = vsub.f32 %v1394, %v1396
    %v1398 = vmul.f32 %v1397, -0.5
    %1400 = vrot.lane.b32.xlu0 %v1398, 112
    %v1401 = vpop.permute.xlu0 %1400
    %v1403 = vsel %vm601, %v1401, 0.0
    %1404 = vadd.xlane.f32.xlu0 %v1403
    %v1405 = vpop.xlane.xlu0 %1404
    %v1406 = vadd.f32 %v1405, 0.0
    %v1407 = vsub.f32 %v1387, %v578
    %v1408 = vmul.f32 %v1407, %v1407
    %v1409 = vsel %vm601, %v1408, 0.0
    %1410 = vadd.xlane.f32.xlu0 %v1409
    %v1411 = vpop.xlane.xlu0 %1410
    %v1412 = vrcp.pop 16.0
    %v1413 = vmul.f32 %v1411, %v1412
    %v1414 = vadd.f32 %v1413, 0.0
    %v1415 = vadd.f32 %v1387, 0.0
    %1416 = vrot.lane.b32.xlu0 %v1381, 80
    %v1417 = vpop.permute.xlu0 %1416
    %v1419 = vmul.f32 %v154, %v1417
    %1421 = vrot.lane.b32.xlu0 %v1419, 32
    %v1422 = vpop.permute.xlu0 %1421
    %v1424 = vadd.f32 %v1376, %v1422
    %1425 = vrot.lane.b32.xlu0 %v1398, 80
    %v1426 = vpop.permute.xlu0 %1425
    %v1428 = vsel %vm601, %v1426, 0.0
    %1429 = vadd.xlane.f32.xlu0 %v1428
    %v1430 = vpop.xlane.xlu0 %1429
    %v1431 = vadd.f32 %v1406, %v1430
    %1432 = vrot.lane.b32.xlu0 %v578, 32
    %v1433 = vpop.permute.xlu0 %1432
    %v1435 = vsub.f32 %v1424, %v1433
    %v1436 = vmul.f32 %v1435, %v1435
    %1438 = vrot.lane.b32.xlu0 %v1436, 96
    %v1439 = vpop.permute.xlu0 %1438
    %v1441 = vsel %vm601, %v1439, 0.0
    %1442 = vadd.xlane.f32.xlu0 %v1441
    %v1443 = vpop.xlane.xlu0 %1442
    %v1444 = vmul.f32 %v1443, %v1412
    %v1445 = vadd.f32 %v1414, %v1444
    %1447 = vrot.lane.b32.xlu0 %v1424, 96
    %v1448 = vpop.permute.xlu0 %1447
    %v1450 = vadd.f32 %v1415, %v1448
    %1451 = vrot.lane.b32.xlu0 %v1381, 48
    %v1452 = vpop.permute.xlu0 %1451
    %v1454 = vmul.f32 %v154, %v1452
    %1456 = vrot.lane.b32.xlu0 %v1454, 64
    %v1457 = vpop.permute.xlu0 %1456
    %v1459 = vadd.f32 %v1376, %v1457
    %1460 = vrot.lane.b32.xlu0 %v1398, 48
    %v1461 = vpop.permute.xlu0 %1460
    %v1463 = vsel %vm601, %v1461, 0.0
    %1464 = vadd.xlane.f32.xlu0 %v1463
    %v1465 = vpop.xlane.xlu0 %1464
    %v1466 = vadd.f32 %v1431, %v1465
    %1467 = vrot.lane.b32.xlu0 %v578, 64
    %v1468 = vpop.permute.xlu0 %1467
    %v1470 = vsub.f32 %v1459, %v1468
    %v1471 = vmul.f32 %v1470, %v1470
    %1473 = vrot.lane.b32.xlu0 %v1471, 64
    %v1474 = vpop.permute.xlu0 %1473
    %v1476 = vsel %vm601, %v1474, 0.0
    %1477 = vadd.xlane.f32.xlu0 %v1476
    %v1478 = vpop.xlane.xlu0 %1477
    %v1479 = vmul.f32 %v1478, %v1412
    %v1480 = vadd.f32 %v1445, %v1479
    %1482 = vrot.lane.b32.xlu0 %v1459, 64
    %v1483 = vpop.permute.xlu0 %1482
    %v1485 = vadd.f32 %v1450, %v1483
    %v1486 = vmul.f32 %v1485, 0.33333334
    %v1487 = vld [vmem:[#allocation14] sm:$0xff]
    %v1488 = vld [vmem:[#allocation14 + $0x8] sm:$0xff]
    %v1489 = vld [vmem:[#allocation14 + $0x10] sm:$0xff]
    %v1490 = vld [vmem:[#allocation14 + $0x18] sm:$0xff]
    %v1491 = vld [vmem:[#allocation14 + $0x20] sm:$0xff]
    %v1492 = vld [vmem:[#allocation14 + $0x28] sm:$0xff]
    %v1493 = vld [vmem:[#allocation14 + $0x30] sm:$0xff]
    %v1494 = vld [vmem:[#allocation14 + $0x38] sm:$0xff]
    %v1495 = vld [vmem:[#allocation14 + $0x40] sm:$0xff]
    %v1496 = vld [vmem:[#allocation14 + $0x48] sm:$0xff]
    %v1497 = vld [vmem:[#allocation14 + $0x50] sm:$0xff]
    %v1498 = vld [vmem:[#allocation14 + $0x58] sm:$0xff]
    %v1499 = vld [vmem:[#allocation14 + $0x60] sm:$0xff]
    %v1500 = vld [vmem:[#allocation14 + $0x68] sm:$0xff]
    %v1501 = vld [vmem:[#allocation14 + $0x70] sm:$0xff]
    %v1502 = vld [vmem:[#allocation14 + $0x78] sm:$0xff]
    %v1503 = vld [vmem:[#allocation16] sm:$0xff]
    %v1505 = vlaneseq
    %v1506 = vshrl.u32 %v1505, 7
    %v1507 = vsub.s32 0, %v1506
    %v1508 = vrot.slane %v1503, %v1507
    %v1509 = vlaneseq
    %v1510 = vshrl.u32 %v1509, 7
    %v1511 = vsub.s32 1, %v1510
    %v1512 = vrot.slane %v1503, %v1511
    %v1513 = vlaneseq
    %v1514 = vshrl.u32 %v1513, 7
    %v1515 = vsub.s32 2, %v1514
    %v1516 = vrot.slane %v1503, %v1515
    %v1517 = vlaneseq
    %v1518 = vshrl.u32 %v1517, 7
    %v1519 = vsub.s32 3, %v1518
    %v1520 = vrot.slane %v1503, %v1519
    %v1521 = vlaneseq
    %v1522 = vshrl.u32 %v1521, 7
    %v1523 = vsub.s32 4, %v1522
    %v1524 = vrot.slane %v1503, %v1523
    %v1525 = vlaneseq
    %v1526 = vshrl.u32 %v1525, 7
    %v1527 = vsub.s32 5, %v1526
    %v1528 = vrot.slane %v1503, %v1527
    %v1529 = vlaneseq
    %v1530 = vshrl.u32 %v1529, 7
    %v1531 = vsub.s32 6, %v1530
    %v1532 = vrot.slane %v1503, %v1531
    %v1533 = vlaneseq
    %v1534 = vshrl.u32 %v1533, 7
    %v1535 = vsub.s32 7, %v1534
    %v1536 = vrot.slane %v1503, %v1535
    %v1546 = vsel %vm601, %v1486, 0
    %1548 = vmatprep.subr.mxu0 %v1488
    %1549 = vmatpush1.msra.mxu0 %v1487
    %1550 = vmatprep.subr.mxu0 %v1496
    %1551 = vmatpush1.msra.mxu0 %v1495
    %1552 = vmatprep.subr.mxu0 0.0
    %1553 = vmatpush1.msra.mxu0 0.0
    %1554 = vmatprep.subr.mxu0 0.0
    %1555 = vmatpush1.msra.mxu0 0.0
    %1556 = vmatprep.subr.mxu0 0.0
    %1557 = vmatpush1.msra.mxu0 0.0
    %1558 = vmatprep.subr.mxu0 0.0
    %1559 = vmatpush1.msra.mxu0 0.0
    %1560 = vmatprep.subr.mxu0 0.0
    %1561 = vmatpush1.msra.mxu0 0.0
    %1562 = vmatprep.subr.mxu0 0.0
    %1563 = vmatpush1.msra.mxu0 0.0
    %1564 = vmatprep.subr.mxu0 0.0
    %1565 = vmatpush1.msra.mxu0 0.0
    %1566 = vmatprep.subr.mxu0 0.0
    %1567 = vmatpush1.msra.mxu0 0.0
    %1568 = vmatprep.subr.mxu0 0.0
    %1569 = vmatpush1.msra.mxu0 0.0
    %1570 = vmatprep.subr.mxu0 0.0
    %1571 = vmatpush1.msra.mxu0 0.0
    %1572 = vmatprep.subr.mxu0 0.0
    %1573 = vmatpush1.msra.mxu0 0.0
    %1574 = vmatprep.subr.mxu0 0.0
    %1575 = vmatpush1.msra.mxu0 0.0
    %1576 = vmatprep.subr.mxu0 0.0
    %1577 = vmatpush1.msra.mxu0 0.0
    %1578 = vmatprep.subr.mxu0 0.0
    %1579 = vmatpush1.msra.mxu0 0.0
    %1580 = vmatprep.subr.mxu0 0.0
    %1581 = vmatpush1.msra.mxu0 0.0
    %1582 = vmatprep.subr.mxu0 0.0
    %1583 = vmatpush1.msra.mxu0 0.0
    %1584 = vmatprep.subr.mxu0 0.0
    %1585 = vmatpush1.msra.mxu0 0.0
    %1586 = vmatprep.subr.mxu0 0.0
    %1587 = vmatpush1.msra.mxu0 0.0
    %1588 = vmatprep.subr.mxu0 0.0
    %1589 = vmatpush1.msra.mxu0 0.0
    %1590 = vmatprep.subr.mxu0 0.0
    %1591 = vmatpush1.msra.mxu0 0.0
    %1592 = vmatprep.subr.mxu0 0.0
    %1593 = vmatpush1.msra.mxu0 0.0
    %1594 = vmatprep.subr.mxu0 0.0
    %1595 = vmatpush1.msra.mxu0 0.0
    %1596 = vmatprep.subr.mxu0 0.0
    %1597 = vmatpush1.msra.mxu0 0.0
    %1598 = vmatprep.subr.mxu0 0.0
    %1599 = vmatpush1.msra.mxu0 0.0
    %1600 = vmatprep.subr.mxu0 0.0
    %1601 = vmatpush1.msra.mxu0 0.0
    %1602 = vmatprep.subr.mxu0 0.0
    %1603 = vmatpush1.msra.mxu0 0.0
    %1604 = vmatprep.subr.mxu0 0.0
    %1605 = vmatpush1.msra.mxu0 0.0
    %1606 = vmatprep.subr.mxu0 0.0
    %1607 = vmatpush1.msra.mxu0 0.0
    %1608 = vmatprep.subr.mxu0 0.0
    %1609 = vmatpush1.msra.mxu0 0.0
    %1610 = vmatprep.subr.mxu0 0.0
    %1611 = vmatpush1.msra.mxu0 0.0
    %1612 = vmatprep.mubr.f32.mxu0 0.0
    %1613 = vmatmul.mubr.f32.gmra.mrb[0].mxu0 %v1546
    %v1614 = vpop.f32.mrb[0].mxu0
    %v1615 = vadd.f32 %v1508, %v1614
    %v1616 = vpop.f32.mrb[0].mxu0
    %v1617 = vadd.f32 %v1512, %v1616
    %1618 = vdwg.mxu0
    %1619 = vmatprep.subr.mxu0 %v1490
    %1620 = vmatpush1.msra.mxu0 %v1489
    %1621 = vmatprep.subr.mxu0 %v1498
    %1622 = vmatpush1.msra.mxu0 %v1497
    %1623 = vmatprep.subr.mxu0 0.0
    %1624 = vmatpush1.msra.mxu0 0.0
    %1625 = vmatprep.subr.mxu0 0.0
    %1626 = vmatpush1.msra.mxu0 0.0
    %1627 = vmatprep.subr.mxu0 0.0
    %1628 = vmatpush1.msra.mxu0 0.0
    %1629 = vmatprep.subr.mxu0 0.0
    %1630 = vmatpush1.msra.mxu0 0.0
    %1631 = vmatprep.subr.mxu0 0.0
    %1632 = vmatpush1.msra.mxu0 0.0
    %1633 = vmatprep.subr.mxu0 0.0
    %1634 = vmatpush1.msra.mxu0 0.0
    %1635 = vmatprep.subr.mxu0 0.0
    %1636 = vmatpush1.msra.mxu0 0.0
    %1637 = vmatprep.subr.mxu0 0.0
    %1638 = vmatpush1.msra.mxu0 0.0
    %1639 = vmatprep.subr.mxu0 0.0
    %1640 = vmatpush1.msra.mxu0 0.0
    %1641 = vmatprep.subr.mxu0 0.0
    %1642 = vmatpush1.msra.mxu0 0.0
    %1643 = vmatprep.subr.mxu0 0.0
    %1644 = vmatpush1.msra.mxu0 0.0
    %1645 = vmatprep.subr.mxu0 0.0
    %1646 = vmatpush1.msra.mxu0 0.0
    %1647 = vmatprep.subr.mxu0 0.0
    %1648 = vmatpush1.msra.mxu0 0.0
    %1649 = vmatprep.subr.mxu0 0.0
    %1650 = vmatpush1.msra.mxu0 0.0
    %1651 = vmatprep.subr.mxu0 0.0
    %1652 = vmatpush1.msra.mxu0 0.0
    %1653 = vmatprep.subr.mxu0 0.0
    %1654 = vmatpush1.msra.mxu0 0.0
    %1655 = vmatprep.subr.mxu0 0.0
    %1656 = vmatpush1.msra.mxu0 0.0
    %1657 = vmatprep.subr.mxu0 0.0
    %1658 = vmatpush1.msra.mxu0 0.0
    %1659 = vmatprep.subr.mxu0 0.0
    %1660 = vmatpush1.msra.mxu0 0.0
    %1661 = vmatprep.subr.mxu0 0.0
    %1662 = vmatpush1.msra.mxu0 0.0
    %1663 = vmatprep.subr.mxu0 0.0
    %1664 = vmatpush1.msra.mxu0 0.0
    %1665 = vmatprep.subr.mxu0 0.0
    %1666 = vmatpush1.msra.mxu0 0.0
    %1667 = vmatprep.subr.mxu0 0.0
    %1668 = vmatpush1.msra.mxu0 0.0
    %1669 = vmatprep.subr.mxu0 0.0
    %1670 = vmatpush1.msra.mxu0 0.0
    %1671 = vmatprep.subr.mxu0 0.0
    %1672 = vmatpush1.msra.mxu0 0.0
    %1673 = vmatprep.subr.mxu0 0.0
    %1674 = vmatpush1.msra.mxu0 0.0
    %1675 = vmatprep.subr.mxu0 0.0
    %1676 = vmatpush1.msra.mxu0 0.0
    %1677 = vmatprep.subr.mxu0 0.0
    %1678 = vmatpush1.msra.mxu0 0.0
    %1679 = vmatprep.subr.mxu0 0.0
    %1680 = vmatpush1.msra.mxu0 0.0
    %1681 = vmatprep.subr.mxu0 0.0
    %1682 = vmatpush1.msra.mxu0 0.0
    %1683 = vmatprep.mubr.f32.mxu0 0.0
    %1684 = vmatmul.mubr.f32.gmra.mrb[0].mxu0 %v1546
    %v1685 = vpop.f32.mrb[0].mxu0
    %v1686 = vadd.f32 %v1516, %v1685
    %v1687 = vpop.f32.mrb[0].mxu0
    %v1688 = vadd.f32 %v1520, %v1687
    %1689 = vdwg.mxu0
    %1690 = vmatprep.subr.mxu0 %v1492
    %1691 = vmatpush1.msra.mxu0 %v1491
    %1692 = vmatprep.subr.mxu0 %v1500
    %1693 = vmatpush1.msra.mxu0 %v1499
    %1694 = vmatprep.subr.mxu0 0.0
    %1695 = vmatpush1.msra.mxu0 0.0
    %1696 = vmatprep.subr.mxu0 0.0
    %1697 = vmatpush1.msra.mxu0 0.0
    %1698 = vmatprep.subr.mxu0 0.0
    %1699 = vmatpush1.msra.mxu0 0.0
    %1700 = vmatprep.subr.mxu0 0.0
    %1701 = vmatpush1.msra.mxu0 0.0
    %1702 = vmatprep.subr.mxu0 0.0
    %1703 = vmatpush1.msra.mxu0 0.0
    %1704 = vmatprep.subr.mxu0 0.0
    %1705 = vmatpush1.msra.mxu0 0.0
    %1706 = vmatprep.subr.mxu0 0.0
    %1707 = vmatpush1.msra.mxu0 0.0
    %1708 = vmatprep.subr.mxu0 0.0
    %1709 = vmatpush1.msra.mxu0 0.0
    %1710 = vmatprep.subr.mxu0 0.0
    %1711 = vmatpush1.msra.mxu0 0.0
    %1712 = vmatprep.subr.mxu0 0.0
    %1713 = vmatpush1.msra.mxu0 0.0
    %1714 = vmatprep.subr.mxu0 0.0
    %1715 = vmatpush1.msra.mxu0 0.0
    %1716 = vmatprep.subr.mxu0 0.0
    %1717 = vmatpush1.msra.mxu0 0.0
    %1718 = vmatprep.subr.mxu0 0.0
    %1719 = vmatpush1.msra.mxu0 0.0
    %1720 = vmatprep.subr.mxu0 0.0
    %1721 = vmatpush1.msra.mxu0 0.0
    %1722 = vmatprep.subr.mxu0 0.0
    %1723 = vmatpush1.msra.mxu0 0.0
    %1724 = vmatprep.subr.mxu0 0.0
    %1725 = vmatpush1.msra.mxu0 0.0
    %1726 = vmatprep.subr.mxu0 0.0
    %1727 = vmatpush1.msra.mxu0 0.0
    %1728 = vmatprep.subr.mxu0 0.0
    %1729 = vmatpush1.msra.mxu0 0.0
    %1730 = vmatprep.subr.mxu0 0.0
    %1731 = vmatpush1.msra.mxu0 0.0
    %1732 = vmatprep.subr.mxu0 0.0
    %1733 = vmatpush1.msra.mxu0 0.0
    %1734 = vmatprep.subr.mxu0 0.0
    %1735 = vmatpush1.msra.mxu0 0.0
    %1736 = vmatprep.subr.mxu0 0.0
    %1737 = vmatpush1.msra.mxu0 0.0
    %1738 = vmatprep.subr.mxu0 0.0
    %1739 = vmatpush1.msra.mxu0 0.0
    %1740 = vmatprep.subr.mxu0 0.0
    %1741 = vmatpush1.msra.mxu0 0.0
    %1742 = vmatprep.subr.mxu0 0.0
    %1743 = vmatpush1.msra.mxu0 0.0
    %1744 = vmatprep.subr.mxu0 0.0
    %1745 = vmatpush1.msra.mxu0 0.0
    %1746 = vmatprep.subr.mxu0 0.0
    %1747 = vmatpush1.msra.mxu0 0.0
    %1748 = vmatprep.subr.mxu0 0.0
    %1749 = vmatpush1.msra.mxu0 0.0
    %1750 = vmatprep.subr.mxu0 0.0
    %1751 = vmatpush1.msra.mxu0 0.0
    %1752 = vmatprep.subr.mxu0 0.0
    %1753 = vmatpush1.msra.mxu0 0.0
    %1754 = vmatprep.mubr.f32.mxu0 0.0
    %1755 = vmatmul.mubr.f32.gmra.mrb[0].mxu0 %v1546
    %v1756 = vpop.f32.mrb[0].mxu0
    %v1757 = vadd.f32 %v1524, %v1756
    %v1758 = vpop.f32.mrb[0].mxu0
    %v1759 = vadd.f32 %v1528, %v1758
    %1760 = vdwg.mxu0
    %1761 = vmatprep.subr.mxu0 %v1494
    %1762 = vmatpush1.msra.mxu0 %v1493
    %1763 = vmatprep.subr.mxu0 %v1502
    %1764 = vmatpush1.msra.mxu0 %v1501
    %1765 = vmatprep.subr.mxu0 0.0
    %1766 = vmatpush1.msra.mxu0 0.0
    %1767 = vmatprep.subr.mxu0 0.0
    %1768 = vmatpush1.msra.mxu0 0.0
    %1769 = vmatprep.subr.mxu0 0.0
    %1770 = vmatpush1.msra.mxu0 0.0
    %1771 = vmatprep.subr.mxu0 0.0
    %1772 = vmatpush1.msra.mxu0 0.0
    %1773 = vmatprep.subr.mxu0 0.0
    %1774 = vmatpush1.msra.mxu0 0.0
    %1775 = vmatprep.subr.mxu0 0.0
    %1776 = vmatpush1.msra.mxu0 0.0
    %1777 = vmatprep.subr.mxu0 0.0
    %1778 = vmatpush1.msra.mxu0 0.0
    %1779 = vmatprep.subr.mxu0 0.0
    %1780 = vmatpush1.msra.mxu0 0.0
    %1781 = vmatprep.subr.mxu0 0.0
    %1782 = vmatpush1.msra.mxu0 0.0
    %1783 = vmatprep.subr.mxu0 0.0
    %1784 = vmatpush1.msra.mxu0 0.0
    %1785 = vmatprep.subr.mxu0 0.0
    %1786 = vmatpush1.msra.mxu0 0.0
    %1787 = vmatprep.subr.mxu0 0.0
    %1788 = vmatpush1.msra.mxu0 0.0
    %1789 = vmatprep.subr.mxu0 0.0
    %1790 = vmatpush1.msra.mxu0 0.0
    %1791 = vmatprep.subr.mxu0 0.0
    %1792 = vmatpush1.msra.mxu0 0.0
    %1793 = vmatprep.subr.mxu0 0.0
    %1794 = vmatpush1.msra.mxu0 0.0
    %1795 = vmatprep.subr.mxu0 0.0
    %1796 = vmatpush1.msra.mxu0 0.0
    %1797 = vmatprep.subr.mxu0 0.0
    %1798 = vmatpush1.msra.mxu0 0.0
    %1799 = vmatprep.subr.mxu0 0.0
    %1800 = vmatpush1.msra.mxu0 0.0
    %1801 = vmatprep.subr.mxu0 0.0
    %1802 = vmatpush1.msra.mxu0 0.0
    %1803 = vmatprep.subr.mxu0 0.0
    %1804 = vmatpush1.msra.mxu0 0.0
    %1805 = vmatprep.subr.mxu0 0.0
    %1806 = vmatpush1.msra.mxu0 0.0
    %1807 = vmatprep.subr.mxu0 0.0
    %1808 = vmatpush1.msra.mxu0 0.0
    %1809 = vmatprep.subr.mxu0 0.0
    %1810 = vmatpush1.msra.mxu0 0.0
    %1811 = vmatprep.subr.mxu0 0.0
    %1812 = vmatpush1.msra.mxu0 0.0
    %1813 = vmatprep.subr.mxu0 0.0
    %1814 = vmatpush1.msra.mxu0 0.0
    %1815 = vmatprep.subr.mxu0 0.0
    %1816 = vmatpush1.msra.mxu0 0.0
    %1817 = vmatprep.subr.mxu0 0.0
    %1818 = vmatpush1.msra.mxu0 0.0
    %1819 = vmatprep.subr.mxu0 0.0
    %1820 = vmatpush1.msra.mxu0 0.0
    %1821 = vmatprep.subr.mxu0 0.0
    %1822 = vmatpush1.msra.mxu0 0.0
    %1823 = vmatprep.subr.mxu0 0.0
    %1824 = vmatpush1.msra.mxu0 0.0
    %1825 = vmatprep.mubr.f32.mxu0 0.0
    %1826 = vmatmul.mubr.f32.gmra.mrb[0].mxu0 %v1546
    %v1827 = vpop.f32.mrb[0].mxu0
    %v1828 = vadd.f32 %v1532, %v1827
    %v1829 = vpop.f32.mrb[0].mxu0
    %v1830 = vadd.f32 %v1536, %v1829
    %1831 = vdwg.mxu0
    %v1832 = vsub.f32 %v1615, %v146
    %v1833 = vsub.f32 %v1617, %v147
    %v1834 = vsub.f32 %v1686, %v148
    %v1835 = vsub.f32 %v1688, %v149
    %v1836 = vsub.f32 %v1757, %v150
    %v1837 = vsub.f32 %v1759, %v151
    %v1838 = vsub.f32 %v1828, %v152
    %v1839 = vsub.f32 %v1830, %v153
    %v1840 = vmul.f32 %v1832, %v1832
    %v1841 = vmul.f32 %v1833, %v1833
    %v1842 = vmul.f32 %v1834, %v1834
    %v1843 = vmul.f32 %v1835, %v1835
    %v1844 = vmul.f32 %v1836, %v1836
    %v1845 = vmul.f32 %v1837, %v1837
    %v1846 = vmul.f32 %v1838, %v1838
    %v1847 = vmul.f32 %v1839, %v1839
    %v1848 = vadd.f32 %v1840, %v1841
    %v1849 = vadd.f32 %v1848, %v1842
    %v1850 = vadd.f32 %v1849, %v1843
    %v1851 = vadd.f32 %v1850, %v1844
    %v1852 = vadd.f32 %v1851, %v1845
    %v1853 = vadd.f32 %v1852, %v1846
    %v1854 = vadd.f32 %v1853, %v1847
    %1855 = vadd.xlane.f32.xlu0 %v1854
    %v1856 = vpop.xlane.xlu0 %1855
    %1857 = vst [vmem:[#allocation17] sm:$0xff] %v1615
    %1858 = vst [vmem:[#allocation17 + $0x8] sm:$0xff] %v1617
    %1859 = vst [vmem:[#allocation17 + $0x10] sm:$0xff] %v1686
    %1860 = vst [vmem:[#allocation17 + $0x18] sm:$0xff] %v1688
    %1861 = vst [vmem:[#allocation17 + $0x20] sm:$0xff] %v1757
    %1862 = vst [vmem:[#allocation17 + $0x28] sm:$0xff] %v1759
    %1863 = vst [vmem:[#allocation17 + $0x30] sm:$0xff] %v1828
    %1864 = vst [vmem:[#allocation17 + $0x38] sm:$0xff] %v1830
    %vm1865 = vcmask 7168
    %v1866 = vsel %vm1865, %v604, %v610
    %vm1867 = vcmask 15360
    %v1868 = vsel %vm1867, %v1866, %v1279
    %vm1869 = vcmask 23552
    %v1870 = vsel %vm1869, %v1868, %v1026
    %vm1871 = vcmask 31744
    %v1872 = vsel %vm1871, %v1870, %v1297
    %vm1873 = vcmask 39936
    %v1874 = vsel %vm1873, %v1872, %v1466
    %vm1875 = vcmask 48128
    %v1876 = vsel %vm1875, %v1874, %v1480
    %vm1877 = vcmask 56320
    %v1878 = vsel %vm1877, %v1876, %v1856
    %1880 = vrot.lane.b32.xlu0 %v567, 16
    %v1881 = vpop.permute.xlu0 %1880
    %1884 = vrot.lane.b32.xlu0 %v1878, 48
    %v1885 = vpop.permute.xlu0 %1884
    %v1887 = vsel %vm601, %v578, %v1881
    %vm1888 = vcmask 261120
    %v1889 = vsel %vm1888, %v1887, %v1881
    %vm1890 = vcmask 392192
    %v1891 = vsel %vm1890, %v1889, %v1885
    %vm1892 = vcmask 457728
    %v1893 = vsel %vm1892, %v1891, 0.0
    %1894 = vst [vmem:[#allocation18] sm:$0xff] %v1893
    // Predicated region
    $region74: #{tpu_custom_call.1} parent=1 // pred_check
      _
    $region75: #{tpu_custom_call.1} parent=1 // pred_check_branch
      %1896 = sbr.rel (0) target = $region77
    $region76: #{tpu_custom_call.1} parent=1 // pred_region
      %s1898 = ssub.s32 1024, 1024
      %1899 = vsyncadd [#allocation4], %s1898
      %s1901 = sshll.u32 [#allocation17], 4
      %s1902 = int_to_ptr.vmem [resolvable:$true] %s1901
      %1904 = dma.vmem_to_hbm [thread:$0]  %s1902, 1024, %s9, [#allocation4]
    $region77: #{tpu_custom_call.1} parent=1 // pred_fallthru
      _
    // Predicated region
    $region78: #{tpu_custom_call.1} parent=1 // pred_check
      _
    $region79: #{tpu_custom_call.1} parent=1 // pred_check_branch
      %1906 = sbr.rel (0) target = $region81
    $region80: #{tpu_custom_call.1} parent=1 // pred_region
      %s1908 = ssub.s32 128, 128
      %1909 = vsyncadd [#allocation19], %s1908
      %s1911 = sshll.u32 [#allocation18], 4
      %s1912 = int_to_ptr.vmem [resolvable:$true] %s1911
      %1914 = dma.vmem_to_hbm [thread:$0]  %s1912, 128, %s10, [#allocation19]
    $region81: #{tpu_custom_call.1} parent=1 // pred_fallthru
      _
    // Predicated region
    $region82: #{tpu_custom_call.1} parent=1 // pred_check
      _
    $region83: #{tpu_custom_call.1} parent=1 // pred_check_branch
      %1916 = sbr.rel (0) target = $region85
    $region84: #{tpu_custom_call.1} parent=1 // pred_region
      %1917 = dma.done [#allocation4], 1024
    $region85: #{tpu_custom_call.1} parent=1 // pred_fallthru
      _
    // Predicated region
    $region86: #{tpu_custom_call.1} parent=1 // pred_check
      _
    $region87: #{tpu_custom_call.1} parent=1 // pred_check_branch
      %1919 = sbr.rel (0) target = $region89
    $region88: #{tpu_custom_call.1} parent=1 // pred_region
      %1920 = dma.done [#allocation19], 128
    $region89: #{tpu_custom_call.1} parent=1 // pred_fallthru
      _
    %1921 = vsyncpa [#allocation3], 1
    %1922 = vsyncpa [#allocation6], 1
    %1923 = vsyncpa [#allocation9], 1
    %1924 = vsyncpa [#allocation12], 1
    %1925 = vsyncpa [#allocation15], 1
    %1926 = vsyncpa [#allocation4], 1
    %1927 = vsyncpa [#allocation19], 1

</llo_original>
